<compile_context>
chip_gen: v7x
topology: tpu7x:2x2x1
jax: 0.10.0
libtpu: 0.0.40
codegen_flags: <defaults>
</compile_context>

<pallas_src>
import functools

import jax
import jax.numpy as jnp
from jax.experimental import pallas as pl
from jax.experimental.pallas import tpu as pltpu


# --------------------------------------------------------------------------- #
# helpers
# --------------------------------------------------------------------------- #
def _pick_cols(total, cap=8192):
    """Largest multiple-of-128 divisor of `total` that is <= cap, else `total`.

    Returned value is always a legal lane-dense last block dim (either a
    multiple of 128 or equal to the full dim)."""
    if total <= cap:
        return total
    start = cap - (cap % 128)
    for d in range(start, 0, -128):
        if total % d == 0:
            return d
    return total


def _im2col_bf16(x_nchw):
    """(N, C, H, W) -> (N, C*9, H*W) bf16 patch matrix for a 3x3 / stride 1 /
    pad 1 conv.  Column m = n*H*W + h*W + w;  row k = c*9 + (dh*3 + dw)."""
    N, C, H, W = x_nchw.shape
    xp = jnp.pad(x_nchw, ((0, 0), (0, 0), (1, 1), (1, 1)))
    cols = [xp[:, :, dh:dh + H, dw:dw + W] for dh in range(3) for dw in range(3)]
    patches = jnp.stack(cols, axis=2)                      # (N, C, 9, H, W)
    return patches.reshape(N, C * 9, H * W).astype(jnp.bfloat16)


# --------------------------------------------------------------------------- #
# Fused u2net heads: conv3x3 (both heads) + sigmoid + threshold + BCE partials
# --------------------------------------------------------------------------- #
def _u2_fused_kernel(a_ref, w_ref, b_ref, t_ref,
                     pred_ref, mask_ref, bce_ref, *, threshold, n_mask):
    a = a_ref[0]                                            # (C*9, tc) bf16
    logits = jnp.dot(w_ref[...], a,
                     preferred_element_type=jnp.float32) + b_ref[...]  # (2*n_mask, tc)
    d0 = logits[:n_mask, :]
    d1 = logits[n_mask:, :]

    # sigmoid prediction + 255/0 threshold mask (head 0 only, like u2net pred)
    p = jax.nn.sigmoid(d0)
    pred_ref[0] = p
    mask_ref[0] = jnp.where(p > threshold, 255.0, 0.0).astype(jnp.bfloat16)

    # stable BCE-with-logits partial sum for both heads vs the same target
    t = t_ref[0].astype(jnp.float32)                        # (n_mask, tc)
    bce0 = jnp.maximum(d0, 0.0) - d0 * t + jnp.log1p(jnp.exp(-jnp.abs(d0)))
    bce1 = jnp.maximum(d1, 0.0) - d1 * t + jnp.log1p(jnp.exp(-jnp.abs(d1)))
    s = jnp.sum(bce0) + jnp.sum(bce1)
    bce_ref[...] = jnp.broadcast_to(s, (1, 1, 8, 128))


def u2net_heads_fused(x, w0, b0, w1, b1, target, threshold, col_cap=8192):
    """Both u2net side-output heads (3x3 conv, pad 1) + sigmoid/threshold/BCE.

    Returns (pred (N,Cm,H,W) f32, mask (N,Cm,H,W) bf16 of 255/0, seg_loss)."""
    N, C, H, W = x.shape
    n_mask = w0.shape[0]
    HW = H * W
    K = C * 9

    A = _im2col_bf16(x)                                              # (N, K, HW)
    W2 = jnp.concatenate([w0, w1], axis=0).reshape(2 * n_mask, K).astype(jnp.bfloat16)
    bias = jnp.concatenate([b0, b1], axis=0).reshape(2 * n_mask, 1).astype(jnp.float32)
    T = target.reshape(N, n_mask, HW).astype(jnp.bfloat16)

    tc = _pick_cols(HW, col_cap)
    G = HW // tc

    kern = functools.partial(_u2_fused_kernel, threshold=threshold, n_mask=n_mask)
    pred, mask, part = pl.pallas_call(
        kern,
        grid=(N, G),
        in_specs=[
            pl.BlockSpec((1, K, tc), lambda n, j: (n, 0, j)),
            pl.BlockSpec((2 * n_mask, K), lambda n, j: (0, 0)),
            pl.BlockSpec((2 * n_mask, 1), lambda n, j: (0, 0)),
            pl.BlockSpec((1, n_mask, tc), lambda n, j: (n, 0, j)),
        ],
        out_specs=(
            pl.BlockSpec((1, n_mask, tc), lambda n, j: (n, 0, j)),
            pl.BlockSpec((1, n_mask, tc), lambda n, j: (n, 0, j)),
            pl.BlockSpec((1, 1, 8, 128), lambda n, j: (n, j, 0, 0)),
        ),
        out_shape=(
            jax.ShapeDtypeStruct((N, n_mask, HW), jnp.float32),
            jax.ShapeDtypeStruct((N, n_mask, HW), jnp.bfloat16),
            jax.ShapeDtypeStruct((N, G, 8, 128), jnp.float32),
        ),
        compiler_params=pltpu.CompilerParams(
            dimension_semantics=("parallel", "parallel")),
    )(A, W2, bias, T)

    pred = pred.reshape(N, n_mask, H, W)
    mask = mask.reshape(N, n_mask, H, W)
    # sum of per-head means, each over N*n_mask*H*W elements
    seg_losses = jnp.sum(part[:, :, 0, 0]) / (N * n_mask * H * W)
    return pred, mask, seg_losses


# --------------------------------------------------------------------------- #
# Generic 3x3 conv (stride 1, pad 1) as channels x (C*9) MXU matmul
# --------------------------------------------------------------------------- #
def _conv_mm_kernel(a_ref, w_ref, b_ref, o_ref):
    a = a_ref[0]                                            # (C*9, tc) bf16
    o_ref[0] = (jnp.dot(w_ref[...], a, preferred_element_type=jnp.float32)
                + b_ref[...])


def conv3x3_pallas(x_nchw, w, b, col_cap=8192):
    """3x3 conv, stride 1, pad 1.  w: (Cout, Cin, 3, 3), b: (Cout,).  NCHW out."""
    N, C, H, W = x_nchw.shape
    Cout = w.shape[0]
    HW = H * W
    K = C * 9

    A = _im2col_bf16(x_nchw)
    W2 = w.reshape(Cout, K).astype(jnp.bfloat16)
    bias = b.reshape(Cout, 1).astype(jnp.float32)

    tc = _pick_cols(HW, col_cap)
    y = pl.pallas_call(
        _conv_mm_kernel,
        grid=(N, HW // tc),
        in_specs=[pl.BlockSpec((1, K, tc), lambda n, j: (n, 0, j)),
                  pl.BlockSpec((Cout, K), lambda n, j: (0, 0)),
                  pl.BlockSpec((Cout, 1), lambda n, j: (0, 0))],
        out_specs=pl.BlockSpec((1, Cout, tc), lambda n, j: (n, 0, j)),
        out_shape=jax.ShapeDtypeStruct((N, Cout, HW), jnp.float32),
        compiler_params=pltpu.CompilerParams(
            dimension_semantics=("parallel", "parallel")),
    )(A, W2, bias)
    return y.reshape(N, Cout, H, W)


# --------------------------------------------------------------------------- #
# FT.normalize(entity, mean, std) — per-channel (x - mean) * inv_std
# --------------------------------------------------------------------------- #
def _norm_kernel(x_ref, m_ref, s_ref, o_ref):
    o_ref[0] = (x_ref[0] - m_ref[...]) * s_ref[...]


def normalize_entity(entity_nchw, mean, std):
    N, C, H, W = entity_nchw.shape
    HW = H * W
    x = entity_nchw.reshape(N, C, HW)
    m = jnp.asarray(mean, jnp.float32).reshape(C, 1)
    inv = (1.0 / jnp.asarray(std, jnp.float32)).reshape(C, 1)
    y = pl.pallas_call(
        _norm_kernel,
        grid=(N,),
        in_specs=[pl.BlockSpec((1, C, HW), lambda n: (n, 0, 0)),
                  pl.BlockSpec((C, 1), lambda n: (0, 0)),
                  pl.BlockSpec((C, 1), lambda n: (0, 0))],
        out_specs=pl.BlockSpec((1, C, HW), lambda n: (n, 0, 0)),
        out_shape=jax.ShapeDtypeStruct((N, C, HW), jnp.float32),
        compiler_params=pltpu.CompilerParams(dimension_semantics=("parallel",)),
    )(x, m, inv)
    return y.reshape(N, C, H, W)


# --------------------------------------------------------------------------- #
# KpLoss: weighted MSE between predicted and target heatmaps (one grid step)
# --------------------------------------------------------------------------- #
def _kp_kernel(w_ref, p_ref, g_ref, o_ref):
    d = p_ref[...] - g_ref[...]                             # (B*K, Hh*Wh)
    per = jnp.mean(d * d, axis=-1, keepdims=True)           # (B*K, 1)
    o_ref[0, 0] = jnp.sum(w_ref[...] * per)


def kp_loss(pred_heat, gt_heat, kps_weights):
    B, Kk, Hh, Wh = pred_heat.shape
    HW = Hh * Wh
    p = pred_heat.reshape(B * Kk, HW)
    g = gt_heat.reshape(B * Kk, HW).astype(jnp.float32)
    w = kps_weights.reshape(B * Kk, 1).astype(jnp.float32)
    s = pl.pallas_call(
        _kp_kernel,
        grid=(1,),
        in_specs=[pl.BlockSpec((B * Kk, 1), lambda i: (0, 0)),
                  pl.BlockSpec((B * Kk, HW), lambda i: (0, 0)),
                  pl.BlockSpec((B * Kk, HW), lambda i: (0, 0))],
        out_specs=pl.BlockSpec(memory_space=pltpu.MemorySpace.SMEM),
        out_shape=jax.ShapeDtypeStruct((1, 1), jnp.float32),
        compiler_params=pltpu.CompilerParams(dimension_semantics=("arbitrary",)),
    )(w, p, g)
    return s[0, 0] / B


# --------------------------------------------------------------------------- #
# SealNet forward (training-path tensor semantics)
# --------------------------------------------------------------------------- #
def sealnet_forward(params, instances, threshold=0.5):
    x = instances['resized_image']                       # (N, 3, H, W)
    mask_target = instances['masked_image']              # (N, Cm, H, W)

    # u2net stub: both side-output heads + sigmoid/threshold + BCE, one kernel
    pred_images, pred_masks, seg_losses = u2net_heads_fused(
        x, params['u2_w0'], params['u2_b0'],
        params['u2_w1'], params['u2_b1'],
        mask_target, threshold)

    # TODO(synk): assign_proposal (cv2 contours / shapely expand / pyclipper /
    # minAreaRect / warpAffine / imwrite) is host-side geometry; entities are
    # consumed directly from instances['entity'].
    ent_ds = instances['entity'][:, :, ::4, ::4]          # downsample BEFORE normalize
    ent_norm = normalize_entity(ent_ds,
                                mean=[0.485, 0.456, 0.406],
                                std=[0.229, 0.224, 0.225])

    # hrnet stub: 3x3 conv head -> heatmaps at fixed_size // 4
    out_instances = conv3x3_pallas(ent_norm, params['hr_w'], params['hr_b'])

    keys_losses = kp_loss(out_instances, instances['heatmap'],
                          instances['kps_weights'])

    losses = {'seg_losses': seg_losses, 'keys_losses': keys_losses}
    return losses, pred_images, pred_masks, out_instances


# --------------------------------------------------------------------------- #
if __name__ == "__main__":
    key = jax.random.PRNGKey(0)
    k0, k1, k2, kx, km, ke, kh = jax.random.split(key, 7)

    N, H, W = 2, 64, 64          # small stand-in for fixed_size=(256, 256)
    Hh, Wh = H // 4, W // 4      # heatmap_hw = fixed_size // 4
    NUM_MASKS = 4                # line / line_shrink / oval / oval_shrink
    NUM_KPS = 4

    params = {
        'u2_w0': 0.1 * jax.random.normal(k0, (NUM_MASKS, 3, 3, 3), jnp.float32),
        'u2_b0': jnp.zeros((NUM_MASKS,), jnp.float32),
        'u2_w1': 0.1 * jax.random.normal(k1, (NUM_MASKS, 3, 3, 3), jnp.float32),
        'u2_b1': jnp.zeros((NUM_MASKS,), jnp.float32),
        'hr_w':  0.1 * jax.random.normal(k2, (NUM_KPS, 3, 3, 3), jnp.float32),
        'hr_b':  jnp.zeros((NUM_KPS,), jnp.float32),
    }

    instances = {
        'resized_image': jax.random.uniform(kx, (N, 3, H, W), jnp.float32),
        'masked_image': (jax.random.uniform(km, (N, NUM_MASKS, H, W)) > 0.5
                         ).astype(jnp.float32),
        'entity': jax.random.uniform(ke, (N, 3, H, W), jnp.float32),
        'heatmap': jax.random.uniform(kh, (N, NUM_KPS, Hh, Wh), jnp.float32),
        'kps_weights': jnp.ones((N, NUM_KPS), jnp.float32),
    }

    losses, pred_images, pred_masks, heatmaps = sealnet_forward(
        params, instances, threshold=0.5)

    jax.block_until_ready((losses, pred_images, pred_masks, heatmaps))

    assert pred_images.shape == (N, NUM_MASKS, H, W)
    assert pred_masks.shape == (N, NUM_MASKS, H, W)
    assert heatmaps.shape == (N, NUM_KPS, Hh, Wh)
    assert jnp.isfinite(losses['seg_losses']) and jnp.isfinite(losses['keys_losses'])

    print("KERNEL_OK")
</pallas_src>

<mosaic_0001>
module attributes {stable_mosaic.version = 11 : i64} {
  func.func @_u2_fused_kernel(%arg0: i32, %arg1: i32, %arg2: memref<1x27x4096xbf16, #tpu.memory_space<vmem>>, %arg3: memref<8x27xbf16, #tpu.memory_space<vmem>>, %arg4: memref<8x1xf32, #tpu.memory_space<vmem>>, %arg5: memref<1x4x4096xbf16, #tpu.memory_space<vmem>>, %arg6: memref<1x4x4096xf32, #tpu.memory_space<vmem>>, %arg7: memref<1x4x4096xbf16, #tpu.memory_space<vmem>>, %arg8: memref<1x1x8x128xf32, #tpu.memory_space<vmem>>) attributes {dimension_semantics = [#tpu.dimension_semantics<parallel>, #tpu.dimension_semantics<parallel>], iteration_bounds = array<i64: 2, 1>, scalar_prefetch = 0 : i64, scratch_operands = 0 : i64, tpu.core_type = #tpu.core_type<tc>, window_params = [{transform_indices = @transform_0, window_bounds = array<i64: 1, 27, 4096>}, {pipeline_mode = #tpu.pipeline_mode<synchronous>, transform_indices = @transform_1, window_bounds = array<i64: 8, 27>}, {pipeline_mode = #tpu.pipeline_mode<synchronous>, transform_indices = @transform_2, window_bounds = array<i64: 8, 1>}, {transform_indices = @transform_3, window_bounds = array<i64: 1, 4, 4096>}, {transform_indices = @transform_4, window_bounds = array<i64: 1, 4, 4096>}, {transform_indices = @transform_5, window_bounds = array<i64: 1, 4, 4096>}, {transform_indices = @transform_6, window_bounds = array<i64: 1, 1, 8, 128>}]} {
    %c0 = arith.constant 0 : index
    %c0_0 = arith.constant 0 : index
    %c0_1 = arith.constant 0 : index
    %0 = vector.load %arg2[%c0, %c0_0, %c0_1] : memref<1x27x4096xbf16, #tpu.memory_space<vmem>>, vector<1x27x4096xbf16>
    %1 = vector.shape_cast %0 : vector<1x27x4096xbf16> to vector<27x4096xbf16>
    %c0_2 = arith.constant 0 : index
    %c0_3 = arith.constant 0 : index
    %2 = vector.load %arg3[%c0_2, %c0_3] : memref<8x27xbf16, #tpu.memory_space<vmem>>, vector<8x27xbf16>
    %cst = arith.constant dense<0.000000e+00> : vector<8x4096xf32>
    %3 = tpu.matmul %2, %1, %cst {dimension_numbers = #tpu.dot_dimension_numbers<[1], [0], [0], [1], [0, 0, 1, 1], [], []>} : vector<8x27xbf16>, vector<27x4096xbf16>, vector<8x4096xf32> -> vector<8x4096xf32>
    %c0_4 = arith.constant 0 : index
    %c0_5 = arith.constant 0 : index
    %4 = vector.load %arg4[%c0_4, %c0_5] : memref<8x1xf32, #tpu.memory_space<vmem>>, vector<8x1xf32>
    %5 = vector.broadcast %4 : vector<8x1xf32> to vector<8x4096xf32>
    %6 = arith.addf %3, %5 : vector<8x4096xf32>
    %7 = vector.extract_strided_slice %6 {offsets = [0, 0], sizes = [4, 4096], strides = [1, 1]} : vector<8x4096xf32> to vector<4x4096xf32>
    %8 = vector.extract_strided_slice %6 {offsets = [4, 0], sizes = [4, 4096], strides = [1, 1]} : vector<8x4096xf32> to vector<4x4096xf32>
    %9 = arith.negf %7 : vector<4x4096xf32>
    %10 = math.exp %9 : vector<4x4096xf32>
    %cst_6 = arith.constant 1.000000e+00 : f32
    %11 = vector.broadcast %cst_6 : f32 to vector<4x4096xf32>
    %12 = arith.addf %11, %10 : vector<4x4096xf32>
    %13 = arith.divf %11, %12 : vector<4x4096xf32>
    %c0_7 = arith.constant 0 : index
    %c0_8 = arith.constant 0 : index
    %c0_9 = arith.constant 0 : index
    %14 = vector.load %arg6[%c0_7, %c0_8, %c0_9] : memref<1x4x4096xf32, #tpu.memory_space<vmem>>, vector<1x4x4096xf32>
    %15 = vector.shape_cast %14 : vector<1x4x4096xf32> to vector<4x4096xf32>
    %16 = vector.shape_cast %13 : vector<4x4096xf32> to vector<1x4x4096xf32>
    tpu.vector_store %arg6[%c0_7, %c0_8, %c0_9], %16 {strides = array<i32>} : memref<1x4x4096xf32, #tpu.memory_space<vmem>>, vector<1x4x4096xf32>,
    %cst_10 = arith.constant 5.000000e-01 : f32
    %17 = vector.broadcast %cst_10 : f32 to vector<4x4096xf32>
    %18 = arith.cmpf ogt, %13, %17 : vector<4x4096xf32>
    %cst_11 = arith.constant 2.550000e+02 : f32
    %cst_12 = arith.constant 0.000000e+00 : f32
    %19 = vector.broadcast %cst_11 : f32 to vector<4x4096xf32>
    %20 = vector.broadcast %cst_12 : f32 to vector<4x4096xf32>
    %21 = arith.select %18, %19, %20 : vector<4x4096xi1>, vector<4x4096xf32>
    %22 = arith.truncf %21 : vector<4x4096xf32> to vector<4x4096xbf16>
    %c0_13 = arith.constant 0 : index
    %c0_14 = arith.constant 0 : index
    %c0_15 = arith.constant 0 : index
    %23 = vector.load %arg7[%c0_13, %c0_14, %c0_15] : memref<1x4x4096xbf16, #tpu.memory_space<vmem>>, vector<1x4x4096xbf16>
    %24 = vector.shape_cast %23 : vector<1x4x4096xbf16> to vector<4x4096xbf16>
    %25 = vector.shape_cast %22 : vector<4x4096xbf16> to vector<1x4x4096xbf16>
    tpu.vector_store %arg7[%c0_13, %c0_14, %c0_15], %25 {strides = array<i32>} : memref<1x4x4096xbf16, #tpu.memory_space<vmem>>, vector<1x4x4096xbf16>,
    %c0_16 = arith.constant 0 : index
    %c0_17 = arith.constant 0 : index
    %c0_18 = arith.constant 0 : index
    %26 = vector.load %arg5[%c0_16, %c0_17, %c0_18] : memref<1x4x4096xbf16, #tpu.memory_space<vmem>>, vector<1x4x4096xbf16>
    %27 = vector.shape_cast %26 : vector<1x4x4096xbf16> to vector<4x4096xbf16>
    %28 = arith.extf %27 : vector<4x4096xbf16> to vector<4x4096xf32>
    %cst_19 = arith.constant 0.000000e+00 : f32
    %29 = vector.broadcast %cst_19 : f32 to vector<4x4096xf32>
    %30 = arith.maximumf %7, %29 : vector<4x4096xf32>
    %31 = arith.mulf %7, %28 : vector<4x4096xf32>
    %32 = arith.subf %30, %31 : vector<4x4096xf32>
    %33 = math.absf %7 : vector<4x4096xf32>
    %cst_20 = arith.constant 0.000000e+00 : f32
    %34 = vector.broadcast %cst_20 : f32 to vector<4x4096xf32>
    %35 = arith.subf %34, %33 : vector<4x4096xf32>
    %36 = math.exp %35 : vector<4x4096xf32>
    %37 = math.log1p %36 : vector<4x4096xf32>
    %38 = arith.addf %32, %37 : vector<4x4096xf32>
    %cst_21 = arith.constant 0.000000e+00 : f32
    %39 = vector.broadcast %cst_21 : f32 to vector<4x4096xf32>
    %40 = arith.maximumf %8, %39 : vector<4x4096xf32>
    %41 = arith.mulf %8, %28 : vector<4x4096xf32>
    %42 = arith.subf %40, %41 : vector<4x4096xf32>
    %43 = math.absf %8 : vector<4x4096xf32>
    %cst_22 = arith.constant 0.000000e+00 : f32
    %44 = vector.broadcast %cst_22 : f32 to vector<4x4096xf32>
    %45 = arith.subf %44, %43 : vector<4x4096xf32>
    %46 = math.exp %45 : vector<4x4096xf32>
    %47 = math.log1p %46 : vector<4x4096xf32>
    %48 = arith.addf %42, %47 : vector<4x4096xf32>
    %49 = vector.shape_cast %38 : vector<4x4096xf32> to vector<1x4x4096xf32>
    %cst_23 = arith.constant dense<0.000000e+00> : vector<1xf32>
    %50 = vector.multi_reduction <add>, %49, %cst_23 [1, 2] : vector<1x4x4096xf32> to vector<1xf32>
    %51 = vector.shape_cast %50 : vector<1xf32> to vector<1x1x1xf32>
    %52 = vector.extract %51[0, 0, 0] : f32 from vector<1x1x1xf32>
    %53 = vector.shape_cast %48 : vector<4x4096xf32> to vector<1x4x4096xf32>
    %cst_24 = arith.constant dense<0.000000e+00> : vector<1xf32>
    %54 = vector.multi_reduction <add>, %53, %cst_24 [1, 2] : vector<1x4x4096xf32> to vector<1xf32>
    %55 = vector.shape_cast %54 : vector<1xf32> to vector<1x1x1xf32>
    %56 = vector.extract %55[0, 0, 0] : f32 from vector<1x1x1xf32>
    %57 = arith.addf %52, %56 : f32
    %58 = vector.broadcast %57 : f32 to vector<1x1x8x128xf32>
    %c0_25 = arith.constant 0 : index
    %c0_26 = arith.constant 0 : index
    %c0_27 = arith.constant 0 : index
    %c0_28 = arith.constant 0 : index
    %59 = vector.load %arg8[%c0_25, %c0_26, %c0_27, %c0_28] : memref<1x1x8x128xf32, #tpu.memory_space<vmem>>, vector<1x1x8x128xf32>
    tpu.vector_store %arg8[%c0_25, %c0_26, %c0_27, %c0_28], %58 {strides = array<i32>} : memref<1x1x8x128xf32, #tpu.memory_space<vmem>>, vector<1x1x8x128xf32>,
    return
  }
  func.func @transform_0(%arg0: i32, %arg1: i32) -> (i32, i32, i32) {
    %c0_i32 = arith.constant 0 : i32
    %c0_i32_0 = arith.constant 0 : i32
    return %arg0, %c0_i32, %arg1 : i32, i32, i32
  }
  func.func @transform_1(%arg0: i32, %arg1: i32) -> (i32, i32) {
    %c0_i32 = arith.constant 0 : i32
    %c0_i32_0 = arith.constant 0 : i32
    %c0_i32_1 = arith.constant 0 : i32
    return %c0_i32, %c0_i32_0 : i32, i32
  }
  func.func @transform_2(%arg0: i32, %arg1: i32) -> (i32, i32) {
    %c0_i32 = arith.constant 0 : i32
    %c0_i32_0 = arith.constant 0 : i32
    %c0_i32_1 = arith.constant 0 : i32
    return %c0_i32, %c0_i32_0 : i32, i32
  }
  func.func @transform_3(%arg0: i32, %arg1: i32) -> (i32, i32, i32) {
    %c0_i32 = arith.constant 0 : i32
    %c0_i32_0 = arith.constant 0 : i32
    return %arg0, %c0_i32, %arg1 : i32, i32, i32
  }
  func.func @transform_4(%arg0: i32, %arg1: i32) -> (i32, i32, i32) {
    %c0_i32 = arith.constant 0 : i32
    %c0_i32_0 = arith.constant 0 : i32
    return %arg0, %c0_i32, %arg1 : i32, i32, i32
  }
  func.func @transform_5(%arg0: i32, %arg1: i32) -> (i32, i32, i32) {
    %c0_i32 = arith.constant 0 : i32
    %c0_i32_0 = arith.constant 0 : i32
    return %arg0, %c0_i32, %arg1 : i32, i32, i32
  }
  func.func @transform_6(%arg0: i32, %arg1: i32) -> (i32, i32, i32, i32) {
    %c0_i32 = arith.constant 0 : i32
    %c0_i32_0 = arith.constant 0 : i32
    %c0_i32_1 = arith.constant 0 : i32
    return %arg0, %arg1, %c0_i32, %c0_i32_0 : i32, i32, i32, i32
  }
}

</mosaic_0001>

<llo_original>
// kernel: tpu_custom_call.1
$region0: #{tpu_custom_call.1}
  #allocation0 [shape = 'u32[]', space=smem, size = 0x4, offset = 0x4, fixed_abs, tag = 'smem constant byte address 0x4 - core index']
  #allocation1 [shape = 'u32[144,128]{1,0:T(1,128)}', space=vmem, size = 0x12000, scoped, tag = 'internal scratch']
  %s0 = inlined_call_operand.vmem [shape: bf16[2,27,4096], index: 0, kind: input, shape index: {}]
  %s1 = inlined_call_operand.vmem [shape: bf16[8,27], index: 1, kind: input, shape index: {}]
  %s2 = inlined_call_operand.vmem [shape: f32[8,1], index: 2, kind: input, shape index: {}]
  %s3 = inlined_call_operand.vmem [shape: bf16[2,4,4096], index: 3, kind: input, shape index: {}]
  %s4 = inlined_call_operand.hbm [shape: f32[2,4,4096], index: 4, kind: output, shape index: {0}]
  %s5 = inlined_call_operand.hbm [shape: bf16[2,4,4096], index: 5, kind: output, shape index: {1}]
  %s6 = inlined_call_operand.hbm [shape: f32[2,1,8,128], index: 6, kind: output, shape index: {2}]
  %7 = xla_tuple %s4, %s5, %s6
  %s8 = sld [smem:[#allocation0]]
  $region65: #{tpu_custom_call.1} parent=0
    _
  %s10 = ssub.s32 1, %s8
  %s11 = scalar_select 0, %s10, %s8
  $region1: #{tpu_custom_call.1} parent=0
    #allocation2 [shape = 'u8[131072]{0}', space=vmem, size = 0x20000, scoped, tag = 'output window, operand 0']
    #allocation3 [shape = 's32[2]{0}', space=sflag, size = 0x8, scoped, tag = 'scoped memory for tpu_custom_call.1']
    #allocation4 [shape = 'u8[65536]{0}', space=vmem, size = 0x10000, scoped, tag = 'output window, operand 1']
    #allocation5 [shape = 's32[2]{0}', space=sflag, size = 0x8, scoped, tag = 'scoped memory for tpu_custom_call.1']
    #allocation6 [shape = 'u8[8192]{0}', space=vmem, size = 0x2000, scoped, tag = 'output window, operand 2']
    %12 = vsyncpa [#allocation3], 0
    %s13 = scalar_lea.sflag [#allocation3], 1
    %14 = vsyncpa %s13, 0
    %15 = vsyncpa [#allocation5], 0
    %s16 = scalar_lea.sflag [#allocation5], 1
    %17 = vsyncpa %s16, 0
    loop: start=0, step=1, limit=4
    $region2: #{tpu_custom_call.1} parent=1 // loop_pre_header
      _
    $region3: #{tpu_custom_call.1} parent=1 // loop_header
      %s19 = sphi 0, %s23
      %p20 = scmp.ge.s32.totalorder %s19, 4
      %s26 = sphi 0, %s38
      %s27 = sphi 0, %s34
      %s28 = sphi 0, %s26
      %s29 = sphi 0, %s27
      %s30 = sphi 0, %s28
      %s31 = sphi 0, %s29
      %s43 = sphi 0, %s45
      %s46 = sphi 0, %s43
      %s47 = sphi 0, %s46
      %s63 = sphi 0, %s47
      %s67 = sphi 0, %s67
      %s69 = sphi 0, %s67
      %s70 = sphi 0, %s69
      %s84 = sphi 0, %s70
      %s88 = sphi 0, %s88
      %s90 = sphi 0, %s88
      %s91 = sphi 0, %s90
      %s105 = sphi 0, %s91
      %s113 = sphi 0, %s115
      %s116 = sphi 0, %s113
      %s117 = sphi 0, %s116
      %s133 = sphi 0, %s117
      %s141 = sphi 0, %s143
      %s144 = sphi 0, %s141
      %s145 = sphi 0, %s144
      %s161 = sphi 0, %s145
      %s169 = sphi 0, %s171
      %s172 = sphi 0, %s169
      %s173 = sphi 0, %s172
      %s189 = sphi 0, %s173
      %s197 = sphi 0, %s199
      %s200 = sphi 0, %s197
      %s201 = sphi 0, %s200
      %s217 = sphi 0, %s201
    $region4: #{tpu_custom_call.1} parent=1 // loop_header_branch
      %22 = sbr.rel (%p20) target = $region8
    $region5: #{tpu_custom_call.1} parent=1 // loop_body
      %s24 = ssub.s32 %s19, 1
      %s25 = ssub.s32 %s19, 2
      %s32 = sadd.s32 1, %s27
      %p33 = scmp.ge.s32.totalorder %s32, 1
      %s34 = scalar_select %p33, 0, %s32
      %s35 = sadd.s32 1, %s26
      %s36 = scalar_select %p33, %s35, %s26
      %p37 = scmp.ge.s32.totalorder %s36, 2
      %s38 = scalar_select %p37, 0, %s36
      %s39 = ssub.s32 %s26, %s38
      %s40 = ssub.s32 %s27, %s34
      %s41 = sor.u32 %s39, %s40
      %p42 = scmp.eq.s32.totalorder %s41, 0
      %s44 = sadd.s32 %s43, 1
      %s45 = scalar_select %p42, %s43, %s44
      %p48 = pneg %p42
      %p49 = scmp.eq.s32.totalorder %s19, 1
      %p50 = por %p48, %p49
      %p51 = scmp.ne.s32.totalorder %s43, %s46
      %p52 = scmp.eq.s32.totalorder %s19, 0
      %p53 = por %p51, %p52
      %p54 = scmp.ne.s32.totalorder %s43, %s46
      %p55 = scmp.eq.s32.totalorder %s24, 1
      %p56 = por %p54, %p55
      %p57 = scmp.ne.s32.totalorder %s46, %s47
      %p58 = scmp.eq.s32.totalorder %s24, 0
      %p59 = por %p57, %p58
      %p60 = scmp.ne.s32.totalorder %s46, %s47
      %p61 = scmp.eq.s32.totalorder %s25, 1
      %p62 = por %p60, %p61
      %p64 = scmp.ne.s32.totalorder %s47, %s63
      %p65 = scmp.eq.s32.totalorder %s25, 0
      %p66 = por %p64, %p65
      %s68 = sadd.s32 %s67, 1
      %p71 = scmp.eq.s32.totalorder %s19, 1
      %p72 = scmp.ne.s32.totalorder %s67, %s69
      %p73 = scmp.eq.s32.totalorder %s19, 0
      %p74 = por %p72, %p73
      %p75 = scmp.ne.s32.totalorder %s67, %s69
      %p76 = scmp.eq.s32.totalorder %s24, 1
      %p77 = por %p75, %p76
      %p78 = scmp.ne.s32.totalorder %s69, %s70
      %p79 = scmp.eq.s32.totalorder %s24, 0
      %p80 = por %p78, %p79
      %p81 = scmp.ne.s32.totalorder %s69, %s70
      %p82 = scmp.eq.s32.totalorder %s25, 1
      %p83 = por %p81, %p82
      %p85 = scmp.ne.s32.totalorder %s70, %s84
      %p86 = scmp.eq.s32.totalorder %s25, 0
      %p87 = por %p85, %p86
      %s89 = sadd.s32 %s88, 1
      %p92 = scmp.eq.s32.totalorder %s19, 1
      %p93 = scmp.ne.s32.totalorder %s88, %s90
      %p94 = scmp.eq.s32.totalorder %s19, 0
      %p95 = por %p93, %p94
      %p96 = scmp.ne.s32.totalorder %s88, %s90
      %p97 = scmp.eq.s32.totalorder %s24, 1
      %p98 = por %p96, %p97
      %p99 = scmp.ne.s32.totalorder %s90, %s91
      %p100 = scmp.eq.s32.totalorder %s24, 0
      %p101 = por %p99, %p100
      %p102 = scmp.ne.s32.totalorder %s90, %s91
      %p103 = scmp.eq.s32.totalorder %s25, 1
      %p104 = por %p102, %p103
      %p106 = scmp.ne.s32.totalorder %s91, %s105
      %p107 = scmp.eq.s32.totalorder %s25, 0
      %p108 = por %p106, %p107
      %s109 = ssub.s32 %s26, %s38
      %s110 = ssub.s32 %s27, %s34
      %s111 = sor.u32 %s109, %s110
      %p112 = scmp.eq.s32.totalorder %s111, 0
      %s114 = sadd.s32 %s113, 1
      %s115 = scalar_select %p112, %s113, %s114
      %p118 = pneg %p112
      %p119 = scmp.eq.s32.totalorder %s19, 1
      %p120 = por %p118, %p119
      %p121 = scmp.ne.s32.totalorder %s113, %s116
      %p122 = scmp.eq.s32.totalorder %s19, 0
      %p123 = por %p121, %p122
      %p124 = scmp.ne.s32.totalorder %s113, %s116
      %p125 = scmp.eq.s32.totalorder %s24, 1
      %p126 = por %p124, %p125
      %p127 = scmp.ne.s32.totalorder %s116, %s117
      %p128 = scmp.eq.s32.totalorder %s24, 0
      %p129 = por %p127, %p128
      %p130 = scmp.ne.s32.totalorder %s116, %s117
      %p131 = scmp.eq.s32.totalorder %s25, 1
      %p132 = por %p130, %p131
      %p134 = scmp.ne.s32.totalorder %s117, %s133
      %p135 = scmp.eq.s32.totalorder %s25, 0
      %p136 = por %p134, %p135
      %s137 = ssub.s32 %s26, %s38
      %s138 = ssub.s32 %s27, %s34
      %s139 = sor.u32 %s137, %s138
      %p140 = scmp.eq.s32.totalorder %s139, 0
      %s142 = sadd.s32 %s141, 1
      %s143 = scalar_select %p140, %s141, %s142
      %p146 = pneg %p140
      %p147 = scmp.eq.s32.totalorder %s19, 1
      %p148 = por %p146, %p147
      %p149 = scmp.ne.s32.totalorder %s141, %s144
      %p150 = scmp.eq.s32.totalorder %s19, 0
      %p151 = por %p149, %p150
      %p152 = scmp.ne.s32.totalorder %s141, %s144
      %p153 = scmp.eq.s32.totalorder %s24, 1
      %p154 = por %p152, %p153
      %p155 = scmp.ne.s32.totalorder %s144, %s145
      %p156 = scmp.eq.s32.totalorder %s24, 0
      %p157 = por %p155, %p156
      %p158 = scmp.ne.s32.totalorder %s144, %s145
      %p159 = scmp.eq.s32.totalorder %s25, 1
      %p160 = por %p158, %p159
      %p162 = scmp.ne.s32.totalorder %s145, %s161
      %p163 = scmp.eq.s32.totalorder %s25, 0
      %p164 = por %p162, %p163
      %s165 = ssub.s32 %s26, %s38
      %s166 = ssub.s32 %s27, %s34
      %s167 = sor.u32 %s165, %s166
      %p168 = scmp.eq.s32.totalorder %s167, 0
      %s170 = sadd.s32 %s169, 1
      %s171 = scalar_select %p168, %s169, %s170
      %p174 = pneg %p168
      %p175 = scmp.eq.s32.totalorder %s19, 1
      %p176 = por %p174, %p175
      %p177 = scmp.ne.s32.totalorder %s169, %s172
      %p178 = scmp.eq.s32.totalorder %s19, 0
      %p179 = por %p177, %p178
      %p180 = scmp.ne.s32.totalorder %s169, %s172
      %p181 = scmp.eq.s32.totalorder %s24, 1
      %p182 = por %p180, %p181
      %p183 = scmp.ne.s32.totalorder %s172, %s173
      %p184 = scmp.eq.s32.totalorder %s24, 0
      %p185 = por %p183, %p184
      %p186 = scmp.ne.s32.totalorder %s172, %s173
      %p187 = scmp.eq.s32.totalorder %s25, 1
      %p188 = por %p186, %p187
      %p190 = scmp.ne.s32.totalorder %s173, %s189
      %p191 = scmp.eq.s32.totalorder %s25, 0
      %p192 = por %p190, %p191
      %s193 = ssub.s32 %s26, %s38
      %s194 = ssub.s32 %s27, %s34
      %s195 = sor.u32 %s193, %s194
      %p196 = scmp.eq.s32.totalorder %s195, 0
      %s198 = sadd.s32 %s197, 1
      %s199 = scalar_select %p196, %s197, %s198
      %p202 = pneg %p196
      %p203 = scmp.eq.s32.totalorder %s19, 1
      %p204 = por %p202, %p203
      %p205 = scmp.ne.s32.totalorder %s197, %s200
      %p206 = scmp.eq.s32.totalorder %s19, 0
      %p207 = por %p205, %p206
      %p208 = scmp.ne.s32.totalorder %s197, %s200
      %p209 = scmp.eq.s32.totalorder %s24, 1
      %p210 = por %p208, %p209
      %p211 = scmp.ne.s32.totalorder %s200, %s201
      %p212 = scmp.eq.s32.totalorder %s24, 0
      %p213 = por %p211, %p212
      %p214 = scmp.ne.s32.totalorder %s200, %s201
      %p215 = scmp.eq.s32.totalorder %s25, 1
      %p216 = por %p214, %p215
      %p218 = scmp.ne.s32.totalorder %s201, %s217
      %p219 = scmp.eq.s32.totalorder %s25, 0
      %p220 = por %p218, %p219
      %p221 = scmp.le.s32.totalorder 1, %s19
      %p222 = scmp.lt.s32.totalorder %s19, 3
      %p223 = pnand %p221, %p222
      %p224 = pneg %p223
      // Predicated region
      $region9: #{tpu_custom_call.1} parent=5 // pred_check
        _
      $region10: #{tpu_custom_call.1} parent=5 // pred_check_branch
        %226 = sbr.rel (%p223) target = $region12
      $region11: #{tpu_custom_call.1} parent=5 // pred_region
        %s227 = ssub.s32 %s19, 1
        // Predicated region
        $region13: #{tpu_custom_call.1} parent=11 // pred_check
          %p228 = pneg %p80
        $region14: #{tpu_custom_call.1} parent=11 // pred_check_branch
          %230 = sbr.rel (%p228) target = $region16
        $region15: #{tpu_custom_call.1} parent=11 // pred_region
          _
        $region16: #{tpu_custom_call.1} parent=11 // pred_fallthru
          _
        // Predicated region
        $region17: #{tpu_custom_call.1} parent=11 // pred_check
          %p231 = pneg %p101
        $region18: #{tpu_custom_call.1} parent=11 // pred_check_branch
          %233 = sbr.rel (%p231) target = $region20
        $region19: #{tpu_custom_call.1} parent=11 // pred_region
          _
        $region20: #{tpu_custom_call.1} parent=11 // pred_fallthru
          _
      $region12: #{tpu_custom_call.1} parent=5 // pred_fallthru
        _
      %p234 = scmp.lt.s32.totalorder %s19, 2
      // Predicated region
      $region21: #{tpu_custom_call.1} parent=5 // pred_check
        %p235 = pneg %p234
      $region22: #{tpu_custom_call.1} parent=5 // pred_check_branch
        %237 = sbr.rel (%p235) target = $region24
      $region23: #{tpu_custom_call.1} parent=5 // pred_region
        // Predicated region
        $region25: #{tpu_custom_call.1} parent=23 // pred_check
          %p238 = pneg %p53
        $region26: #{tpu_custom_call.1} parent=23 // pred_check_branch
          %240 = sbr.rel (%p238) target = $region28
        $region27: #{tpu_custom_call.1} parent=23 // pred_region
          %s241 = smul.u32 32, %s27
          %p242 = scmp.lt.s32.totalorder %s26, 1
          %s243 = scalar_select %p242, %s26, 1
          %p244 = scmp.lt.s32.totalorder %s241, 31
          %s245 = scalar_select %p244, %s241, 31
          %s246 = smul.addr %s243, 128
          %s247 = sadd.s32 %s245, %s246
          %s248 = smul.addr %s247, 4
          %s249 = scalar_lea.vmem %s0, %s248
          %s250 = smul.u32 32, %s27
        $region28: #{tpu_custom_call.1} parent=23 // pred_fallthru
          _
        // Predicated region
        $region29: #{tpu_custom_call.1} parent=23 // pred_check
          %p251 = pneg %p123
        $region30: #{tpu_custom_call.1} parent=23 // pred_check_branch
          %253 = sbr.rel (%p251) target = $region32
        $region31: #{tpu_custom_call.1} parent=23 // pred_region
          %s254 = smul.u32 32, %s27
          %p255 = scmp.lt.s32.totalorder %s26, 1
          %s256 = scalar_select %p255, %s26, 1
          %p257 = scmp.lt.s32.totalorder %s254, 31
          %s258 = scalar_select %p257, %s254, 31
          %s259 = smul.addr %s256, 32
          %s260 = sadd.s32 %s258, %s259
          %s261 = smul.addr %s260, 2
          %s262 = scalar_lea.vmem %s3, %s261
          %s263 = smul.u32 32, %s27
        $region32: #{tpu_custom_call.1} parent=23 // pred_fallthru
          _
      $region24: #{tpu_custom_call.1} parent=5 // pred_fallthru
        _
      %p264 = scmp.le.s32.totalorder 1, %s19
      %p265 = scmp.lt.s32.totalorder %s19, 3
      %p266 = pnand %p264, %p265
      %p267 = pneg %p266
      // Predicated region
      $region33: #{tpu_custom_call.1} parent=5 // pred_check
        _
      $region34: #{tpu_custom_call.1} parent=5 // pred_check_branch
        %269 = sbr.rel (%p266) target = $region36
      $region35: #{tpu_custom_call.1} parent=5 // pred_region
        %s270 = ssub.s32 %s19, 1
        %s271 = smul.u32 32, %s29
        %p272 = scmp.lt.s32.totalorder %s28, 1
        %s273 = scalar_select %p272, %s28, 1
        %p274 = scmp.lt.s32.totalorder %s271, 31
        %s275 = scalar_select %p274, %s271, 31
        %s276 = smul.addr %s273, 128
        %s277 = sadd.s32 %s275, %s276
        %s278 = smul.addr %s277, 4
        %s279 = scalar_lea.vmem %s0, %s278
        %p280 = pneg %p59
        %p281 = pneg %p56
        %p282 = pneg %p80
        %p283 = pneg %p77
        %p284 = pneg %p101
        %p285 = pneg %p98
        %s286 = smul.u32 32, %s29
        %p287 = scmp.lt.s32.totalorder %s28, 1
        %s288 = scalar_select %p287, %s28, 1
        %p289 = scmp.lt.s32.totalorder %s286, 31
        %s290 = scalar_select %p289, %s286, 31
        %s291 = smul.addr %s288, 32
        %s292 = sadd.s32 %s290, %s291
        %s293 = smul.addr %s292, 2
        %s294 = scalar_lea.vmem %s3, %s293
        %p295 = pneg %p129
        %p296 = pneg %p126
        %p297 = pneg %p157
        %p298 = pneg %p154
        %s299 = sand.u32 %s144, 1
        %s300 = scalar_lea.sflag [#allocation3], %s299
        %s301 = sand.u32 %s144, 1
        %s302 = smul.addr %s301, 128
        %s303 = scalar_lea.vmem [#allocation2], %s302
        %p304 = pneg %p185
        %p305 = pneg %p182
        %s306 = sand.u32 %s24, 1
        %s307 = scalar_lea.sflag [#allocation5], %s306
        %s308 = sand.u32 %s172, 1
        %s309 = smul.addr %s308, 64
        %s310 = scalar_lea.vmem [#allocation4], %s309
        %p311 = pneg %p213
        %p312 = pneg %p210
        %s313 = sand.u32 %s24, 1
        %s314 = scalar_lea.sflag [#allocation5], %s313
        %s315 = sand.u32 %s200, 1
        %s316 = smul.addr %s315, 8
        %s317 = scalar_lea.vmem [#allocation6], %s316
        %s318 = smul.u32 32, %s29
        %p319 = scmp.lt.s32.totalorder %s28, 1
        %s320 = scalar_select %p319, %s28, 1
        %p321 = scmp.lt.s32.totalorder %s318, 31
        %s322 = scalar_select %p321, %s318, 31
        %s323 = smul.addr %s320, 128
        %s324 = sadd.s32 %s322, %s323
        %s325 = smul.addr %s324, 4
        %s326 = scalar_lea.vmem %s0, %s325
        %s327 = smul.u32 32, %s29
        %s328 = smul.u32 32, %s29
        %p329 = scmp.lt.s32.totalorder %s28, 1
        %s330 = scalar_select %p329, %s28, 1
        %p331 = scmp.lt.s32.totalorder %s328, 31
        %s332 = scalar_select %p331, %s328, 31
        %s333 = smul.addr %s330, 32
        %s334 = sadd.s32 %s332, %s333
        %s335 = smul.addr %s334, 2
        %s336 = scalar_lea.vmem %s3, %s335
        %s337 = smul.u32 32, %s29
        %s338 = smul.u32 32, %s29
        %s339 = smul.u32 32, %s29
        %v341 = vld [vmem:[%s326] sm:$0xff]
        %v342 = vld [vmem:[%s326 + $0x8] sm:$0xff]
        %v343 = vld [vmem:[%s326 + $0x10] sm:$0xff]
        %v344 = vld [vmem:[%s326 + $0x18] sm:$0xff]
        %v345 = vld [vmem:[%s326 + $0x20] sm:$0xff]
        %v346 = vld [vmem:[%s326 + $0x28] sm:$0xff]
        %v347 = vld [vmem:[%s326 + $0x30] sm:$0xff]
        %v348 = vld [vmem:[%s326 + $0x38] sm:$0xff]
        %v349 = vld [vmem:[%s326 + $0x40] sm:$0xff]
        %v350 = vld [vmem:[%s326 + $0x48] sm:$0xff]
        %v351 = vld [vmem:[%s326 + $0x50] sm:$0xff]
        %v352 = vld [vmem:[%s326 + $0x58] sm:$0xff]
        %v353 = vld [vmem:[%s326 + $0x60] sm:$0xff]
        %v354 = vld [vmem:[%s326 + $0x68] sm:$0xff]
        %v355 = vld [vmem:[%s326 + $0x70] sm:$0xff]
        %v356 = vld [vmem:[%s326 + $0x78] sm:$0xff]
        %v357 = vld [vmem:[%s326 + $0x80] sm:$0xff]
        %v358 = vld [vmem:[%s326 + $0x88] sm:$0xff]
        %v359 = vld [vmem:[%s326 + $0x90] sm:$0xff]
        %v360 = vld [vmem:[%s326 + $0x98] sm:$0xff]
        %v361 = vld [vmem:[%s326 + $0xa0] sm:$0xff]
        %v362 = vld [vmem:[%s326 + $0xa8] sm:$0xff]
        %v363 = vld [vmem:[%s326 + $0xb0] sm:$0xff]
        %v364 = vld [vmem:[%s326 + $0xb8] sm:$0xff]
        %v365 = vld [vmem:[%s326 + $0xc0] sm:$0xff]
        %v366 = vld [vmem:[%s326 + $0xc8] sm:$0xff]
        %v367 = vld [vmem:[%s326 + $0xd0] sm:$0xff]
        %v368 = vld [vmem:[%s326 + $0xd8] sm:$0xff]
        %v369 = vld [vmem:[%s326 + $0xe0] sm:$0xff]
        %v370 = vld [vmem:[%s326 + $0xe8] sm:$0xff]
        %v371 = vld [vmem:[%s326 + $0xf0] sm:$0xff]
        %v372 = vld [vmem:[%s326 + $0xf8] sm:$0xff]
        %v373 = vld [vmem:[%s326 + $0x100] sm:$0xff]
        %v374 = vld [vmem:[%s326 + $0x108] sm:$0xff]
        %v375 = vld [vmem:[%s326 + $0x110] sm:$0xff]
        %v376 = vld [vmem:[%s326 + $0x118] sm:$0xff]
        %v377 = vld [vmem:[%s326 + $0x120] sm:$0xff]
        %v378 = vld [vmem:[%s326 + $0x128] sm:$0xff]
        %v379 = vld [vmem:[%s326 + $0x130] sm:$0xff]
        %v380 = vld [vmem:[%s326 + $0x138] sm:$0xff]
        %v381 = vld [vmem:[%s326 + $0x140] sm:$0xff]
        %v382 = vld [vmem:[%s326 + $0x148] sm:$0xff]
        %v383 = vld [vmem:[%s326 + $0x150] sm:$0xff]
        %v384 = vld [vmem:[%s326 + $0x158] sm:$0xff]
        %v385 = vld [vmem:[%s326 + $0x160] sm:$0xff]
        %v386 = vld [vmem:[%s326 + $0x168] sm:$0xff]
        %v387 = vld [vmem:[%s326 + $0x170] sm:$0xff]
        %v388 = vld [vmem:[%s326 + $0x178] sm:$0xff]
        %v389 = vld [vmem:[%s326 + $0x180] sm:$0x33]
        %v390 = vld [vmem:[%s326 + $0x188] sm:$0x33]
        %v391 = vld [vmem:[%s326 + $0x190] sm:$0x33]
        %v392 = vld [vmem:[%s326 + $0x198] sm:$0x33]
        %v393 = vld [vmem:[%s326 + $0x1a0] sm:$0x33]
        %v394 = vld [vmem:[%s326 + $0x1a8] sm:$0x33]
        %v395 = vld [vmem:[%s326 + $0x1b0] sm:$0x33]
        %v396 = vld [vmem:[%s326 + $0x1b8] sm:$0x33]
        %v397 = vld [vmem:[%s326 + $0x1c0] sm:$0x33]
        %v398 = vld [vmem:[%s326 + $0x1c8] sm:$0x33]
        %v399 = vld [vmem:[%s326 + $0x1d0] sm:$0x33]
        %v400 = vld [vmem:[%s326 + $0x1d8] sm:$0x33]
        %v401 = vld [vmem:[%s326 + $0x1e0] sm:$0x33]
        %v402 = vld [vmem:[%s326 + $0x1e8] sm:$0x33]
        %v403 = vld [vmem:[%s326 + $0x1f0] sm:$0x33]
        %v404 = vld [vmem:[%s326 + $0x1f8] sm:$0x33]
        %v405 = vld [vmem:[%s1] sm:$0xf]
        %v406 = vld [vmem:[%s2] sm:$0xff]
        %408 = vset.pattern.permute.xlu0 0
        %409 = vperm.xlu0 %408, %v406
        %v410 = vpop.permute.xlu0 %409
        %v476 = vunpack.c.l.b16 %v341
        %v477 = vunpack.c.h.b16 %v341
        %v478 = vunpack.c.l.b16 %v342
        %v479 = vunpack.c.h.b16 %v342
        %v480 = vunpack.c.l.b16 %v343
        %v481 = vunpack.c.h.b16 %v343
        %v482 = vunpack.c.l.b16 %v344
        %v483 = vunpack.c.h.b16 %v344
        %v484 = vunpack.c.l.b16 %v345
        %v485 = vunpack.c.h.b16 %v345
        %v486 = vunpack.c.l.b16 %v346
        %v487 = vunpack.c.h.b16 %v346
        %v488 = vunpack.c.l.b16 %v347
        %v489 = vunpack.c.h.b16 %v347
        %v490 = vunpack.c.l.b16 %v348
        %v491 = vunpack.c.h.b16 %v348
        %v492 = vunpack.c.l.b16 %v349
        %v493 = vunpack.c.h.b16 %v349
        %v494 = vunpack.c.l.b16 %v350
        %v495 = vunpack.c.h.b16 %v350
        %v496 = vunpack.c.l.b16 %v351
        %v497 = vunpack.c.h.b16 %v351
        %v498 = vunpack.c.l.b16 %v352
        %v499 = vunpack.c.h.b16 %v352
        %v500 = vunpack.c.l.b16 %v353
        %v501 = vunpack.c.h.b16 %v353
        %v502 = vunpack.c.l.b16 %v354
        %v503 = vunpack.c.h.b16 %v354
        %v504 = vunpack.c.l.b16 %v355
        %v505 = vunpack.c.h.b16 %v355
        %v506 = vunpack.c.l.b16 %v356
        %v507 = vunpack.c.h.b16 %v356
        %v508 = vunpack.c.l.b16 %v357
        %v509 = vunpack.c.h.b16 %v357
        %v510 = vunpack.c.l.b16 %v358
        %v511 = vunpack.c.h.b16 %v358
        %v512 = vunpack.c.l.b16 %v359
        %v513 = vunpack.c.h.b16 %v359
        %v514 = vunpack.c.l.b16 %v360
        %v515 = vunpack.c.h.b16 %v360
        %v516 = vunpack.c.l.b16 %v361
        %v517 = vunpack.c.h.b16 %v361
        %v518 = vunpack.c.l.b16 %v362
        %v519 = vunpack.c.h.b16 %v362
        %v520 = vunpack.c.l.b16 %v363
        %v521 = vunpack.c.h.b16 %v363
        %v522 = vunpack.c.l.b16 %v364
        %v523 = vunpack.c.h.b16 %v364
        %v524 = vunpack.c.l.b16 %v365
        %v525 = vunpack.c.h.b16 %v365
        %v526 = vunpack.c.l.b16 %v366
        %v527 = vunpack.c.h.b16 %v366
        %v528 = vunpack.c.l.b16 %v367
        %v529 = vunpack.c.h.b16 %v367
        %v530 = vunpack.c.l.b16 %v368
        %v531 = vunpack.c.h.b16 %v368
        %v532 = vunpack.c.l.b16 %v369
        %v533 = vunpack.c.h.b16 %v369
        %v534 = vunpack.c.l.b16 %v370
        %v535 = vunpack.c.h.b16 %v370
        %v536 = vunpack.c.l.b16 %v371
        %v537 = vunpack.c.h.b16 %v371
        %v538 = vunpack.c.l.b16 %v372
        %v539 = vunpack.c.h.b16 %v372
        %v540 = vunpack.c.l.b16 %v373
        %v541 = vunpack.c.h.b16 %v373
        %v542 = vunpack.c.l.b16 %v374
        %v543 = vunpack.c.h.b16 %v374
        %v544 = vunpack.c.l.b16 %v375
        %v545 = vunpack.c.h.b16 %v375
        %v546 = vunpack.c.l.b16 %v376
        %v547 = vunpack.c.h.b16 %v376
        %v548 = vunpack.c.l.b16 %v377
        %v549 = vunpack.c.h.b16 %v377
        %v550 = vunpack.c.l.b16 %v378
        %v551 = vunpack.c.h.b16 %v378
        %v552 = vunpack.c.l.b16 %v379
        %v553 = vunpack.c.h.b16 %v379
        %v554 = vunpack.c.l.b16 %v380
        %v555 = vunpack.c.h.b16 %v380
        %v556 = vunpack.c.l.b16 %v381
        %v557 = vunpack.c.h.b16 %v381
        %v558 = vunpack.c.l.b16 %v382
        %v559 = vunpack.c.h.b16 %v382
        %v560 = vunpack.c.l.b16 %v383
        %v561 = vunpack.c.h.b16 %v383
        %v562 = vunpack.c.l.b16 %v384
        %v563 = vunpack.c.h.b16 %v384
        %v564 = vunpack.c.l.b16 %v385
        %v565 = vunpack.c.h.b16 %v385
        %v566 = vunpack.c.l.b16 %v386
        %v567 = vunpack.c.h.b16 %v386
        %v568 = vunpack.c.l.b16 %v387
        %v569 = vunpack.c.h.b16 %v387
        %v570 = vunpack.c.l.b16 %v388
        %v571 = vunpack.c.h.b16 %v388
        %v572 = vunpack.c.l.b16 %v389
        %v573 = vunpack.c.h.b16 %v389
        %v574 = vunpack.c.l.b16 %v390
        %v575 = vunpack.c.h.b16 %v390
        %v576 = vunpack.c.l.b16 %v391
        %v577 = vunpack.c.h.b16 %v391
        %v578 = vunpack.c.l.b16 %v392
        %v579 = vunpack.c.h.b16 %v392
        %v580 = vunpack.c.l.b16 %v393
        %v581 = vunpack.c.h.b16 %v393
        %v582 = vunpack.c.l.b16 %v394
        %v583 = vunpack.c.h.b16 %v394
        %v584 = vunpack.c.l.b16 %v395
        %v585 = vunpack.c.h.b16 %v395
        %v586 = vunpack.c.l.b16 %v396
        %v587 = vunpack.c.h.b16 %v396
        %v588 = vunpack.c.l.b16 %v397
        %v589 = vunpack.c.h.b16 %v397
        %v590 = vunpack.c.l.b16 %v398
        %v591 = vunpack.c.h.b16 %v398
        %v592 = vunpack.c.l.b16 %v399
        %v593 = vunpack.c.h.b16 %v399
        %v594 = vunpack.c.l.b16 %v400
        %v595 = vunpack.c.h.b16 %v400
        %v596 = vunpack.c.l.b16 %v401
        %v597 = vunpack.c.h.b16 %v401
        %v598 = vunpack.c.l.b16 %v402
        %v599 = vunpack.c.h.b16 %v402
        %v600 = vunpack.c.l.b16 %v403
        %v601 = vunpack.c.h.b16 %v403
        %v602 = vunpack.c.l.b16 %v404
        %v603 = vunpack.c.h.b16 %v404
        %v604 = vpack.c.b16 %v508, %v476
        %v605 = vpack.c.b16 %v509, %v477
        %v606 = vpack.c.b16 %v510, %v478
        %v607 = vpack.c.b16 %v511, %v479
        %v608 = vpack.c.b16 %v512, %v480
        %v609 = vpack.c.b16 %v513, %v481
        %v610 = vpack.c.b16 %v514, %v482
        %v611 = vpack.c.b16 %v515, %v483
        %v612 = vpack.c.b16 %v516, %v484
        %v613 = vpack.c.b16 %v517, %v485
        %v614 = vpack.c.b16 %v518, %v486
        %v615 = vpack.c.b16 %v519, %v487
        %v616 = vpack.c.b16 %v520, %v488
        %v617 = vpack.c.b16 %v521, %v489
        %v618 = vpack.c.b16 %v522, %v490
        %v619 = vpack.c.b16 %v523, %v491
        %v620 = vpack.c.b16 %v524, %v492
        %v621 = vpack.c.b16 %v525, %v493
        %v622 = vpack.c.b16 %v526, %v494
        %v623 = vpack.c.b16 %v527, %v495
        %v624 = vpack.c.b16 %v528, %v496
        %v625 = vpack.c.b16 %v529, %v497
        %v626 = vpack.c.b16 %v530, %v498
        %v627 = vpack.c.b16 %v531, %v499
        %v628 = vpack.c.b16 %v532, %v500
        %v629 = vpack.c.b16 %v533, %v501
        %v630 = vpack.c.b16 %v534, %v502
        %v631 = vpack.c.b16 %v535, %v503
        %v632 = vpack.c.b16 %v536, %v504
        %v633 = vpack.c.b16 %v537, %v505
        %v634 = vpack.c.b16 %v538, %v506
        %v635 = vpack.c.b16 %v539, %v507
        %v636 = vpack.c.b16 %v572, %v540
        %v637 = vpack.c.b16 %v573, %v541
        %v638 = vpack.c.b16 %v574, %v542
        %v639 = vpack.c.b16 %v575, %v543
        %v640 = vpack.c.b16 %v576, %v544
        %v641 = vpack.c.b16 %v577, %v545
        %v642 = vpack.c.b16 %v578, %v546
        %v643 = vpack.c.b16 %v579, %v547
        %v644 = vpack.c.b16 %v580, %v548
        %v645 = vpack.c.b16 %v581, %v549
        %v646 = vpack.c.b16 %v582, %v550
        %v647 = vpack.c.b16 %v583, %v551
        %v648 = vpack.c.b16 %v584, %v552
        %v649 = vpack.c.b16 %v585, %v553
        %v650 = vpack.c.b16 %v586, %v554
        %v651 = vpack.c.b16 %v587, %v555
        %v652 = vpack.c.b16 %v588, %v556
        %v653 = vpack.c.b16 %v589, %v557
        %v654 = vpack.c.b16 %v590, %v558
        %v655 = vpack.c.b16 %v591, %v559
        %v656 = vpack.c.b16 %v592, %v560
        %v657 = vpack.c.b16 %v593, %v561
        %v658 = vpack.c.b16 %v594, %v562
        %v659 = vpack.c.b16 %v595, %v563
        %v660 = vpack.c.b16 %v596, %v564
        %v661 = vpack.c.b16 %v597, %v565
        %v662 = vpack.c.b16 %v598, %v566
        %v663 = vpack.c.b16 %v599, %v567
        %v664 = vpack.c.b16 %v600, %v568
        %v665 = vpack.c.b16 %v601, %v569
        %v666 = vpack.c.b16 %v602, %v570
        %v667 = vpack.c.b16 %v603, %v571
        %vm700 = vcmask 220160
        %v702 = vsel %vm700, %v405, 0
        %vm704 = vcmask 1044480
        %vm705 = vcmask 1045504
        %v706 = vsel %vm704, 4294967295, 65535
        %v707 = vsel %vm705, %v706, 0
        %v709 = vand.u32 %v636, %v707
        %v712 = vand.u32 %v637, %v707
        %v715 = vand.u32 %v638, %v707
        %v718 = vand.u32 %v639, %v707
        %v721 = vand.u32 %v640, %v707
        %v724 = vand.u32 %v641, %v707
        %v727 = vand.u32 %v642, %v707
        %v730 = vand.u32 %v643, %v707
        %v733 = vand.u32 %v644, %v707
        %v736 = vand.u32 %v645, %v707
        %v739 = vand.u32 %v646, %v707
        %v742 = vand.u32 %v647, %v707
        %v745 = vand.u32 %v648, %v707
        %v748 = vand.u32 %v649, %v707
        %v751 = vand.u32 %v650, %v707
        %v754 = vand.u32 %v651, %v707
        %v757 = vand.u32 %v652, %v707
        %v760 = vand.u32 %v653, %v707
        %v763 = vand.u32 %v654, %v707
        %v766 = vand.u32 %v655, %v707
        %v769 = vand.u32 %v656, %v707
        %v772 = vand.u32 %v657, %v707
        %v775 = vand.u32 %v658, %v707
        %v778 = vand.u32 %v659, %v707
        %v781 = vand.u32 %v660, %v707
        %v784 = vand.u32 %v661, %v707
        %v787 = vand.u32 %v662, %v707
        %v790 = vand.u32 %v663, %v707
        %v793 = vand.u32 %v664, %v707
        %v796 = vand.u32 %v665, %v707
        %v799 = vand.u32 %v666, %v707
        %v802 = vand.u32 %v667, %v707
        %804 = vmatprep.subr.bf16.mxu0 %v605
        %805 = vmatpush1.bf16.msra.mxu0 %v604
        %806 = vmatprep.subr.bf16.mxu0 %v712
        %807 = vmatpush1.bf16.msra.mxu0 %v709
        %808 = vmatprep.subr.bf16.mxu0 0
        %809 = vmatpush1.bf16.msra.mxu0 0
        %810 = vmatprep.subr.bf16.mxu0 0
        %811 = vmatpush1.bf16.msra.mxu0 0
        %812 = vmatprep.subr.bf16.mxu0 0
        %813 = vmatpush1.bf16.msra.mxu0 0
        %814 = vmatprep.subr.bf16.mxu0 0
        %815 = vmatpush1.bf16.msra.mxu0 0
        %816 = vmatprep.subr.bf16.mxu0 0
        %817 = vmatpush1.bf16.msra.mxu0 0
        %818 = vmatprep.subr.bf16.mxu0 0
        %819 = vmatpush1.bf16.msra.mxu0 0
        %820 = vmatprep.subr.bf16.mxu0 0
        %821 = vmatpush1.bf16.msra.mxu0 0
        %822 = vmatprep.subr.bf16.mxu0 0
        %823 = vmatpush1.bf16.msra.mxu0 0
        %824 = vmatprep.subr.bf16.mxu0 0
        %825 = vmatpush1.bf16.msra.mxu0 0
        %826 = vmatprep.subr.bf16.mxu0 0
        %827 = vmatpush1.bf16.msra.mxu0 0
        %828 = vmatprep.subr.bf16.mxu0 0
        %829 = vmatpush1.bf16.msra.mxu0 0
        %830 = vmatprep.subr.bf16.mxu0 0
        %831 = vmatpush1.bf16.msra.mxu0 0
        %832 = vmatprep.subr.bf16.mxu0 0
        %833 = vmatpush1.bf16.msra.mxu0 0
        %834 = vmatprep.subr.bf16.mxu0 0
        %835 = vmatpush1.bf16.msra.mxu0 0
        %836 = vmatprep.mubr.bf16.mxu0 0
        %837 = vmatmul.mubr.bf16.gmra.mrb[0].mxu0 %v702
        %v838 = vpop.f32.mrb[0].mxu0
        %v839 = vadd.f32 %v410, %v838
        %v840 = vpop.f32.mrb[0].mxu0
        %v841 = vadd.f32 %v410, %v840
        %v842 = vpop.f32.mrb[0].mxu0
        %v843 = vpop.f32.mrb[0].mxu0
        %844 = vdwg.mxu0
        %845 = vmatprep.subr.bf16.mxu0 %v607
        %846 = vmatpush1.bf16.msra.mxu0 %v606
        %847 = vmatprep.subr.bf16.mxu0 %v718
        %848 = vmatpush1.bf16.msra.mxu0 %v715
        %849 = vmatprep.subr.bf16.mxu0 0
        %850 = vmatpush1.bf16.msra.mxu0 0
        %851 = vmatprep.subr.bf16.mxu0 0
        %852 = vmatpush1.bf16.msra.mxu0 0
        %853 = vmatprep.subr.bf16.mxu0 0
        %854 = vmatpush1.bf16.msra.mxu0 0
        %855 = vmatprep.subr.bf16.mxu0 0
        %856 = vmatpush1.bf16.msra.mxu0 0
        %857 = vmatprep.subr.bf16.mxu0 0
        %858 = vmatpush1.bf16.msra.mxu0 0
        %859 = vmatprep.subr.bf16.mxu0 0
        %860 = vmatpush1.bf16.msra.mxu0 0
        %861 = vmatprep.subr.bf16.mxu0 0
        %862 = vmatpush1.bf16.msra.mxu0 0
        %863 = vmatprep.subr.bf16.mxu0 0
        %864 = vmatpush1.bf16.msra.mxu0 0
        %865 = vmatprep.subr.bf16.mxu0 0
        %866 = vmatpush1.bf16.msra.mxu0 0
        %867 = vmatprep.subr.bf16.mxu0 0
        %868 = vmatpush1.bf16.msra.mxu0 0
        %869 = vmatprep.subr.bf16.mxu0 0
        %870 = vmatpush1.bf16.msra.mxu0 0
        %871 = vmatprep.subr.bf16.mxu0 0
        %872 = vmatpush1.bf16.msra.mxu0 0
        %873 = vmatprep.subr.bf16.mxu0 0
        %874 = vmatpush1.bf16.msra.mxu0 0
        %875 = vmatprep.subr.bf16.mxu0 0
        %876 = vmatpush1.bf16.msra.mxu0 0
        %877 = vmatprep.mubr.bf16.mxu0 0
        %878 = vmatmul.mubr.bf16.gmra.mrb[0].mxu0 %v702
        %v879 = vpop.f32.mrb[0].mxu0
        %v880 = vadd.f32 %v410, %v879
        %v881 = vpop.f32.mrb[0].mxu0
        %v882 = vadd.f32 %v410, %v881
        %v883 = vpop.f32.mrb[0].mxu0
        %v884 = vpop.f32.mrb[0].mxu0
        %885 = vdwg.mxu0
        %886 = vmatprep.subr.bf16.mxu0 %v609
        %887 = vmatpush1.bf16.msra.mxu0 %v608
        %888 = vmatprep.subr.bf16.mxu0 %v724
        %889 = vmatpush1.bf16.msra.mxu0 %v721
        %890 = vmatprep.subr.bf16.mxu0 0
        %891 = vmatpush1.bf16.msra.mxu0 0
        %892 = vmatprep.subr.bf16.mxu0 0
        %893 = vmatpush1.bf16.msra.mxu0 0
        %894 = vmatprep.subr.bf16.mxu0 0
        %895 = vmatpush1.bf16.msra.mxu0 0
        %896 = vmatprep.subr.bf16.mxu0 0
        %897 = vmatpush1.bf16.msra.mxu0 0
        %898 = vmatprep.subr.bf16.mxu0 0
        %899 = vmatpush1.bf16.msra.mxu0 0
        %900 = vmatprep.subr.bf16.mxu0 0
        %901 = vmatpush1.bf16.msra.mxu0 0
        %902 = vmatprep.subr.bf16.mxu0 0
        %903 = vmatpush1.bf16.msra.mxu0 0
        %904 = vmatprep.subr.bf16.mxu0 0
        %905 = vmatpush1.bf16.msra.mxu0 0
        %906 = vmatprep.subr.bf16.mxu0 0
        %907 = vmatpush1.bf16.msra.mxu0 0
        %908 = vmatprep.subr.bf16.mxu0 0
        %909 = vmatpush1.bf16.msra.mxu0 0
        %910 = vmatprep.subr.bf16.mxu0 0
        %911 = vmatpush1.bf16.msra.mxu0 0
        %912 = vmatprep.subr.bf16.mxu0 0
        %913 = vmatpush1.bf16.msra.mxu0 0
        %914 = vmatprep.subr.bf16.mxu0 0
        %915 = vmatpush1.bf16.msra.mxu0 0
        %916 = vmatprep.subr.bf16.mxu0 0
        %917 = vmatpush1.bf16.msra.mxu0 0
        %918 = vmatprep.mubr.bf16.mxu0 0
        %919 = vmatmul.mubr.bf16.gmra.mrb[0].mxu0 %v702
        %v920 = vpop.f32.mrb[0].mxu0
        %v921 = vadd.f32 %v410, %v920
        %v922 = vpop.f32.mrb[0].mxu0
        %v923 = vadd.f32 %v410, %v922
        %v924 = vpop.f32.mrb[0].mxu0
        %v925 = vpop.f32.mrb[0].mxu0
        %926 = vdwg.mxu0
        %927 = vmatprep.subr.bf16.mxu0 %v611
        %928 = vmatpush1.bf16.msra.mxu0 %v610
        %929 = vmatprep.subr.bf16.mxu0 %v730
        %930 = vmatpush1.bf16.msra.mxu0 %v727
        %931 = vmatprep.subr.bf16.mxu0 0
        %932 = vmatpush1.bf16.msra.mxu0 0
        %933 = vmatprep.subr.bf16.mxu0 0
        %934 = vmatpush1.bf16.msra.mxu0 0
        %935 = vmatprep.subr.bf16.mxu0 0
        %936 = vmatpush1.bf16.msra.mxu0 0
        %937 = vmatprep.subr.bf16.mxu0 0
        %938 = vmatpush1.bf16.msra.mxu0 0
        %939 = vmatprep.subr.bf16.mxu0 0
        %940 = vmatpush1.bf16.msra.mxu0 0
        %941 = vmatprep.subr.bf16.mxu0 0
        %942 = vmatpush1.bf16.msra.mxu0 0
        %943 = vmatprep.subr.bf16.mxu0 0
        %944 = vmatpush1.bf16.msra.mxu0 0
        %945 = vmatprep.subr.bf16.mxu0 0
        %946 = vmatpush1.bf16.msra.mxu0 0
        %947 = vmatprep.subr.bf16.mxu0 0
        %948 = vmatpush1.bf16.msra.mxu0 0
        %949 = vmatprep.subr.bf16.mxu0 0
        %950 = vmatpush1.bf16.msra.mxu0 0
        %951 = vmatprep.subr.bf16.mxu0 0
        %952 = vmatpush1.bf16.msra.mxu0 0
        %953 = vmatprep.subr.bf16.mxu0 0
        %954 = vmatpush1.bf16.msra.mxu0 0
        %955 = vmatprep.subr.bf16.mxu0 0
        %956 = vmatpush1.bf16.msra.mxu0 0
        %957 = vmatprep.subr.bf16.mxu0 0
        %958 = vmatpush1.bf16.msra.mxu0 0
        %959 = vmatprep.mubr.bf16.mxu0 0
        %960 = vmatmul.mubr.bf16.gmra.mrb[0].mxu0 %v702
        %v961 = vpop.f32.mrb[0].mxu0
        %v962 = vadd.f32 %v410, %v961
        %v963 = vpop.f32.mrb[0].mxu0
        %v964 = vadd.f32 %v410, %v963
        %v965 = vpop.f32.mrb[0].mxu0
        %v966 = vpop.f32.mrb[0].mxu0
        %967 = vdwg.mxu0
        %968 = vmatprep.subr.bf16.mxu0 %v613
        %969 = vmatpush1.bf16.msra.mxu0 %v612
        %970 = vmatprep.subr.bf16.mxu0 %v736
        %971 = vmatpush1.bf16.msra.mxu0 %v733
        %972 = vmatprep.subr.bf16.mxu0 0
        %973 = vmatpush1.bf16.msra.mxu0 0
        %974 = vmatprep.subr.bf16.mxu0 0
        %975 = vmatpush1.bf16.msra.mxu0 0
        %976 = vmatprep.subr.bf16.mxu0 0
        %977 = vmatpush1.bf16.msra.mxu0 0
        %978 = vmatprep.subr.bf16.mxu0 0
        %979 = vmatpush1.bf16.msra.mxu0 0
        %980 = vmatprep.subr.bf16.mxu0 0
        %981 = vmatpush1.bf16.msra.mxu0 0
        %982 = vmatprep.subr.bf16.mxu0 0
        %983 = vmatpush1.bf16.msra.mxu0 0
        %984 = vmatprep.subr.bf16.mxu0 0
        %985 = vmatpush1.bf16.msra.mxu0 0
        %986 = vmatprep.subr.bf16.mxu0 0
        %987 = vmatpush1.bf16.msra.mxu0 0
        %988 = vmatprep.subr.bf16.mxu0 0
        %989 = vmatpush1.bf16.msra.mxu0 0
        %990 = vmatprep.subr.bf16.mxu0 0
        %991 = vmatpush1.bf16.msra.mxu0 0
        %992 = vmatprep.subr.bf16.mxu0 0
        %993 = vmatpush1.bf16.msra.mxu0 0
        %994 = vmatprep.subr.bf16.mxu0 0
        %995 = vmatpush1.bf16.msra.mxu0 0
        %996 = vmatprep.subr.bf16.mxu0 0
        %997 = vmatpush1.bf16.msra.mxu0 0
        %998 = vmatprep.subr.bf16.mxu0 0
        %999 = vmatpush1.bf16.msra.mxu0 0
        %1000 = vmatprep.mubr.bf16.mxu0 0
        %1001 = vmatmul.mubr.bf16.gmra.mrb[0].mxu0 %v702
        %v1002 = vpop.f32.mrb[0].mxu0
        %v1003 = vadd.f32 %v410, %v1002
        %v1004 = vpop.f32.mrb[0].mxu0
        %v1005 = vadd.f32 %v410, %v1004
        %v1006 = vpop.f32.mrb[0].mxu0
        %v1007 = vpop.f32.mrb[0].mxu0
        %1008 = vdwg.mxu0
        %1009 = vmatprep.subr.bf16.mxu0 %v615
        %1010 = vmatpush1.bf16.msra.mxu0 %v614
        %1011 = vmatprep.subr.bf16.mxu0 %v742
        %1012 = vmatpush1.bf16.msra.mxu0 %v739
        %1013 = vmatprep.subr.bf16.mxu0 0
        %1014 = vmatpush1.bf16.msra.mxu0 0
        %1015 = vmatprep.subr.bf16.mxu0 0
        %1016 = vmatpush1.bf16.msra.mxu0 0
        %1017 = vmatprep.subr.bf16.mxu0 0
        %1018 = vmatpush1.bf16.msra.mxu0 0
        %1019 = vmatprep.subr.bf16.mxu0 0
        %1020 = vmatpush1.bf16.msra.mxu0 0
        %1021 = vmatprep.subr.bf16.mxu0 0
        %1022 = vmatpush1.bf16.msra.mxu0 0
        %1023 = vmatprep.subr.bf16.mxu0 0
        %1024 = vmatpush1.bf16.msra.mxu0 0
        %1025 = vmatprep.subr.bf16.mxu0 0
        %1026 = vmatpush1.bf16.msra.mxu0 0
        %1027 = vmatprep.subr.bf16.mxu0 0
        %1028 = vmatpush1.bf16.msra.mxu0 0
        %1029 = vmatprep.subr.bf16.mxu0 0
        %1030 = vmatpush1.bf16.msra.mxu0 0
        %1031 = vmatprep.subr.bf16.mxu0 0
        %1032 = vmatpush1.bf16.msra.mxu0 0
        %1033 = vmatprep.subr.bf16.mxu0 0
        %1034 = vmatpush1.bf16.msra.mxu0 0
        %1035 = vmatprep.subr.bf16.mxu0 0
        %1036 = vmatpush1.bf16.msra.mxu0 0
        %1037 = vmatprep.subr.bf16.mxu0 0
        %1038 = vmatpush1.bf16.msra.mxu0 0
        %1039 = vmatprep.subr.bf16.mxu0 0
        %1040 = vmatpush1.bf16.msra.mxu0 0
        %1041 = vmatprep.mubr.bf16.mxu0 0
        %1042 = vmatmul.mubr.bf16.gmra.mrb[0].mxu0 %v702
        %v1043 = vpop.f32.mrb[0].mxu0
        %v1044 = vadd.f32 %v410, %v1043
        %v1045 = vpop.f32.mrb[0].mxu0
        %v1046 = vadd.f32 %v410, %v1045
        %v1047 = vpop.f32.mrb[0].mxu0
        %v1048 = vpop.f32.mrb[0].mxu0
        %1049 = vdwg.mxu0
        %1050 = vmatprep.subr.bf16.mxu0 %v617
        %1051 = vmatpush1.bf16.msra.mxu0 %v616
        %1052 = vmatprep.subr.bf16.mxu0 %v748
        %1053 = vmatpush1.bf16.msra.mxu0 %v745
        %1054 = vmatprep.subr.bf16.mxu0 0
        %1055 = vmatpush1.bf16.msra.mxu0 0
        %1056 = vmatprep.subr.bf16.mxu0 0
        %1057 = vmatpush1.bf16.msra.mxu0 0
        %1058 = vmatprep.subr.bf16.mxu0 0
        %1059 = vmatpush1.bf16.msra.mxu0 0
        %1060 = vmatprep.subr.bf16.mxu0 0
        %1061 = vmatpush1.bf16.msra.mxu0 0
        %1062 = vmatprep.subr.bf16.mxu0 0
        %1063 = vmatpush1.bf16.msra.mxu0 0
        %1064 = vmatprep.subr.bf16.mxu0 0
        %1065 = vmatpush1.bf16.msra.mxu0 0
        %1066 = vmatprep.subr.bf16.mxu0 0
        %1067 = vmatpush1.bf16.msra.mxu0 0
        %1068 = vmatprep.subr.bf16.mxu0 0
        %1069 = vmatpush1.bf16.msra.mxu0 0
        %1070 = vmatprep.subr.bf16.mxu0 0
        %1071 = vmatpush1.bf16.msra.mxu0 0
        %1072 = vmatprep.subr.bf16.mxu0 0
        %1073 = vmatpush1.bf16.msra.mxu0 0
        %1074 = vmatprep.subr.bf16.mxu0 0
        %1075 = vmatpush1.bf16.msra.mxu0 0
        %1076 = vmatprep.subr.bf16.mxu0 0
        %1077 = vmatpush1.bf16.msra.mxu0 0
        %1078 = vmatprep.subr.bf16.mxu0 0
        %1079 = vmatpush1.bf16.msra.mxu0 0
        %1080 = vmatprep.subr.bf16.mxu0 0
        %1081 = vmatpush1.bf16.msra.mxu0 0
        %1082 = vmatprep.mubr.bf16.mxu0 0
        %1083 = vmatmul.mubr.bf16.gmra.mrb[0].mxu0 %v702
        %v1084 = vpop.f32.mrb[0].mxu0
        %v1085 = vadd.f32 %v410, %v1084
        %v1086 = vpop.f32.mrb[0].mxu0
        %v1087 = vadd.f32 %v410, %v1086
        %v1088 = vpop.f32.mrb[0].mxu0
        %v1089 = vpop.f32.mrb[0].mxu0
        %1090 = vdwg.mxu0
        %1091 = vmatprep.subr.bf16.mxu0 %v619
        %1092 = vmatpush1.bf16.msra.mxu0 %v618
        %1093 = vmatprep.subr.bf16.mxu0 %v754
        %1094 = vmatpush1.bf16.msra.mxu0 %v751
        %1095 = vmatprep.subr.bf16.mxu0 0
        %1096 = vmatpush1.bf16.msra.mxu0 0
        %1097 = vmatprep.subr.bf16.mxu0 0
        %1098 = vmatpush1.bf16.msra.mxu0 0
        %1099 = vmatprep.subr.bf16.mxu0 0
        %1100 = vmatpush1.bf16.msra.mxu0 0
        %1101 = vmatprep.subr.bf16.mxu0 0
        %1102 = vmatpush1.bf16.msra.mxu0 0
        %1103 = vmatprep.subr.bf16.mxu0 0
        %1104 = vmatpush1.bf16.msra.mxu0 0
        %1105 = vmatprep.subr.bf16.mxu0 0
        %1106 = vmatpush1.bf16.msra.mxu0 0
        %1107 = vmatprep.subr.bf16.mxu0 0
        %1108 = vmatpush1.bf16.msra.mxu0 0
        %1109 = vmatprep.subr.bf16.mxu0 0
        %1110 = vmatpush1.bf16.msra.mxu0 0
        %1111 = vmatprep.subr.bf16.mxu0 0
        %1112 = vmatpush1.bf16.msra.mxu0 0
        %1113 = vmatprep.subr.bf16.mxu0 0
        %1114 = vmatpush1.bf16.msra.mxu0 0
        %1115 = vmatprep.subr.bf16.mxu0 0
        %1116 = vmatpush1.bf16.msra.mxu0 0
        %1117 = vmatprep.subr.bf16.mxu0 0
        %1118 = vmatpush1.bf16.msra.mxu0 0
        %1119 = vmatprep.subr.bf16.mxu0 0
        %1120 = vmatpush1.bf16.msra.mxu0 0
        %1121 = vmatprep.subr.bf16.mxu0 0
        %1122 = vmatpush1.bf16.msra.mxu0 0
        %1123 = vmatprep.mubr.bf16.mxu0 0
        %1124 = vmatmul.mubr.bf16.gmra.mrb[0].mxu0 %v702
        %v1125 = vpop.f32.mrb[0].mxu0
        %v1126 = vadd.f32 %v410, %v1125
        %v1127 = vpop.f32.mrb[0].mxu0
        %v1128 = vadd.f32 %v410, %v1127
        %v1129 = vpop.f32.mrb[0].mxu0
        %v1130 = vpop.f32.mrb[0].mxu0
        %1131 = vdwg.mxu0
        %1132 = vmatprep.subr.bf16.mxu0 %v621
        %1133 = vmatpush1.bf16.msra.mxu0 %v620
        %1134 = vmatprep.subr.bf16.mxu0 %v760
        %1135 = vmatpush1.bf16.msra.mxu0 %v757
        %1136 = vmatprep.subr.bf16.mxu0 0
        %1137 = vmatpush1.bf16.msra.mxu0 0
        %1138 = vmatprep.subr.bf16.mxu0 0
        %1139 = vmatpush1.bf16.msra.mxu0 0
        %1140 = vmatprep.subr.bf16.mxu0 0
        %1141 = vmatpush1.bf16.msra.mxu0 0
        %1142 = vmatprep.subr.bf16.mxu0 0
        %1143 = vmatpush1.bf16.msra.mxu0 0
        %1144 = vmatprep.subr.bf16.mxu0 0
        %1145 = vmatpush1.bf16.msra.mxu0 0
        %1146 = vmatprep.subr.bf16.mxu0 0
        %1147 = vmatpush1.bf16.msra.mxu0 0
        %1148 = vmatprep.subr.bf16.mxu0 0
        %1149 = vmatpush1.bf16.msra.mxu0 0
        %1150 = vmatprep.subr.bf16.mxu0 0
        %1151 = vmatpush1.bf16.msra.mxu0 0
        %1152 = vmatprep.subr.bf16.mxu0 0
        %1153 = vmatpush1.bf16.msra.mxu0 0
        %1154 = vmatprep.subr.bf16.mxu0 0
        %1155 = vmatpush1.bf16.msra.mxu0 0
        %1156 = vmatprep.subr.bf16.mxu0 0
        %1157 = vmatpush1.bf16.msra.mxu0 0
        %1158 = vmatprep.subr.bf16.mxu0 0
        %1159 = vmatpush1.bf16.msra.mxu0 0
        %1160 = vmatprep.subr.bf16.mxu0 0
        %1161 = vmatpush1.bf16.msra.mxu0 0
        %1162 = vmatprep.subr.bf16.mxu0 0
        %1163 = vmatpush1.bf16.msra.mxu0 0
        %1164 = vmatprep.mubr.bf16.mxu0 0
        %1165 = vmatmul.mubr.bf16.gmra.mrb[0].mxu0 %v702
        %v1166 = vpop.f32.mrb[0].mxu0
        %v1167 = vadd.f32 %v410, %v1166
        %v1168 = vpop.f32.mrb[0].mxu0
        %v1169 = vadd.f32 %v410, %v1168
        %v1170 = vpop.f32.mrb[0].mxu0
        %v1171 = vpop.f32.mrb[0].mxu0
        %1172 = vdwg.mxu0
        %1173 = vmatprep.subr.bf16.mxu0 %v623
        %1174 = vmatpush1.bf16.msra.mxu0 %v622
        %1175 = vmatprep.subr.bf16.mxu0 %v766
        %1176 = vmatpush1.bf16.msra.mxu0 %v763
        %1177 = vmatprep.subr.bf16.mxu0 0
        %1178 = vmatpush1.bf16.msra.mxu0 0
        %1179 = vmatprep.subr.bf16.mxu0 0
        %1180 = vmatpush1.bf16.msra.mxu0 0
        %1181 = vmatprep.subr.bf16.mxu0 0
        %1182 = vmatpush1.bf16.msra.mxu0 0
        %1183 = vmatprep.subr.bf16.mxu0 0
        %1184 = vmatpush1.bf16.msra.mxu0 0
        %1185 = vmatprep.subr.bf16.mxu0 0
        %1186 = vmatpush1.bf16.msra.mxu0 0
        %1187 = vmatprep.subr.bf16.mxu0 0
        %1188 = vmatpush1.bf16.msra.mxu0 0
        %1189 = vmatprep.subr.bf16.mxu0 0
        %1190 = vmatpush1.bf16.msra.mxu0 0
        %1191 = vmatprep.subr.bf16.mxu0 0
        %1192 = vmatpush1.bf16.msra.mxu0 0
        %1193 = vmatprep.subr.bf16.mxu0 0
        %1194 = vmatpush1.bf16.msra.mxu0 0
        %1195 = vmatprep.subr.bf16.mxu0 0
        %1196 = vmatpush1.bf16.msra.mxu0 0
        %1197 = vmatprep.subr.bf16.mxu0 0
        %1198 = vmatpush1.bf16.msra.mxu0 0
        %1199 = vmatprep.subr.bf16.mxu0 0
        %1200 = vmatpush1.bf16.msra.mxu0 0
        %1201 = vmatprep.subr.bf16.mxu0 0
        %1202 = vmatpush1.bf16.msra.mxu0 0
        %1203 = vmatprep.subr.bf16.mxu0 0
        %1204 = vmatpush1.bf16.msra.mxu0 0
        %1205 = vmatprep.mubr.bf16.mxu0 0
        %1206 = vmatmul.mubr.bf16.gmra.mrb[0].mxu0 %v702
        %v1207 = vpop.f32.mrb[0].mxu0
        %v1208 = vadd.f32 %v410, %v1207
        %v1209 = vpop.f32.mrb[0].mxu0
        %v1210 = vadd.f32 %v410, %v1209
        %v1211 = vpop.f32.mrb[0].mxu0
        %v1212 = vpop.f32.mrb[0].mxu0
        %1213 = vdwg.mxu0
        %1214 = vmatprep.subr.bf16.mxu0 %v625
        %1215 = vmatpush1.bf16.msra.mxu0 %v624
        %1216 = vmatprep.subr.bf16.mxu0 %v772
        %1217 = vmatpush1.bf16.msra.mxu0 %v769
        %1218 = vmatprep.subr.bf16.mxu0 0
        %1219 = vmatpush1.bf16.msra.mxu0 0
        %1220 = vmatprep.subr.bf16.mxu0 0
        %1221 = vmatpush1.bf16.msra.mxu0 0
        %1222 = vmatprep.subr.bf16.mxu0 0
        %1223 = vmatpush1.bf16.msra.mxu0 0
        %1224 = vmatprep.subr.bf16.mxu0 0
        %1225 = vmatpush1.bf16.msra.mxu0 0
        %1226 = vmatprep.subr.bf16.mxu0 0
        %1227 = vmatpush1.bf16.msra.mxu0 0
        %1228 = vmatprep.subr.bf16.mxu0 0
        %1229 = vmatpush1.bf16.msra.mxu0 0
        %1230 = vmatprep.subr.bf16.mxu0 0
        %1231 = vmatpush1.bf16.msra.mxu0 0
        %1232 = vmatprep.subr.bf16.mxu0 0
        %1233 = vmatpush1.bf16.msra.mxu0 0
        %1234 = vmatprep.subr.bf16.mxu0 0
        %1235 = vmatpush1.bf16.msra.mxu0 0
        %1236 = vmatprep.subr.bf16.mxu0 0
        %1237 = vmatpush1.bf16.msra.mxu0 0
        %1238 = vmatprep.subr.bf16.mxu0 0
        %1239 = vmatpush1.bf16.msra.mxu0 0
        %1240 = vmatprep.subr.bf16.mxu0 0
        %1241 = vmatpush1.bf16.msra.mxu0 0
        %1242 = vmatprep.subr.bf16.mxu0 0
        %1243 = vmatpush1.bf16.msra.mxu0 0
        %1244 = vmatprep.subr.bf16.mxu0 0
        %1245 = vmatpush1.bf16.msra.mxu0 0
        %1246 = vmatprep.mubr.bf16.mxu0 0
        %1247 = vmatmul.mubr.bf16.gmra.mrb[0].mxu0 %v702
        %v1248 = vpop.f32.mrb[0].mxu0
        %v1249 = vadd.f32 %v410, %v1248
        %v1250 = vpop.f32.mrb[0].mxu0
        %v1251 = vadd.f32 %v410, %v1250
        %v1252 = vpop.f32.mrb[0].mxu0
        %v1253 = vpop.f32.mrb[0].mxu0
        %1254 = vdwg.mxu0
        %1255 = vmatprep.subr.bf16.mxu0 %v627
        %1256 = vmatpush1.bf16.msra.mxu0 %v626
        %1257 = vmatprep.subr.bf16.mxu0 %v778
        %1258 = vmatpush1.bf16.msra.mxu0 %v775
        %1259 = vmatprep.subr.bf16.mxu0 0
        %1260 = vmatpush1.bf16.msra.mxu0 0
        %1261 = vmatprep.subr.bf16.mxu0 0
        %1262 = vmatpush1.bf16.msra.mxu0 0
        %1263 = vmatprep.subr.bf16.mxu0 0
        %1264 = vmatpush1.bf16.msra.mxu0 0
        %1265 = vmatprep.subr.bf16.mxu0 0
        %1266 = vmatpush1.bf16.msra.mxu0 0
        %1267 = vmatprep.subr.bf16.mxu0 0
        %1268 = vmatpush1.bf16.msra.mxu0 0
        %1269 = vmatprep.subr.bf16.mxu0 0
        %1270 = vmatpush1.bf16.msra.mxu0 0
        %1271 = vmatprep.subr.bf16.mxu0 0
        %1272 = vmatpush1.bf16.msra.mxu0 0
        %1273 = vmatprep.subr.bf16.mxu0 0
        %1274 = vmatpush1.bf16.msra.mxu0 0
        %1275 = vmatprep.subr.bf16.mxu0 0
        %1276 = vmatpush1.bf16.msra.mxu0 0
        %1277 = vmatprep.subr.bf16.mxu0 0
        %1278 = vmatpush1.bf16.msra.mxu0 0
        %1279 = vmatprep.subr.bf16.mxu0 0
        %1280 = vmatpush1.bf16.msra.mxu0 0
        %1281 = vmatprep.subr.bf16.mxu0 0
        %1282 = vmatpush1.bf16.msra.mxu0 0
        %1283 = vmatprep.subr.bf16.mxu0 0
        %1284 = vmatpush1.bf16.msra.mxu0 0
        %1285 = vmatprep.subr.bf16.mxu0 0
        %1286 = vmatpush1.bf16.msra.mxu0 0
        %1287 = vmatprep.mubr.bf16.mxu0 0
        %1288 = vmatmul.mubr.bf16.gmra.mrb[0].mxu0 %v702
        %v1289 = vpop.f32.mrb[0].mxu0
        %v1290 = vadd.f32 %v410, %v1289
        %v1291 = vpop.f32.mrb[0].mxu0
        %v1292 = vadd.f32 %v410, %v1291
        %v1293 = vpop.f32.mrb[0].mxu0
        %v1294 = vpop.f32.mrb[0].mxu0
        %1295 = vdwg.mxu0
        %1296 = vmatprep.subr.bf16.mxu0 %v629
        %1297 = vmatpush1.bf16.msra.mxu0 %v628
        %1298 = vmatprep.subr.bf16.mxu0 %v784
        %1299 = vmatpush1.bf16.msra.mxu0 %v781
        %1300 = vmatprep.subr.bf16.mxu0 0
        %1301 = vmatpush1.bf16.msra.mxu0 0
        %1302 = vmatprep.subr.bf16.mxu0 0
        %1303 = vmatpush1.bf16.msra.mxu0 0
        %1304 = vmatprep.subr.bf16.mxu0 0
        %1305 = vmatpush1.bf16.msra.mxu0 0
        %1306 = vmatprep.subr.bf16.mxu0 0
        %1307 = vmatpush1.bf16.msra.mxu0 0
        %1308 = vmatprep.subr.bf16.mxu0 0
        %1309 = vmatpush1.bf16.msra.mxu0 0
        %1310 = vmatprep.subr.bf16.mxu0 0
        %1311 = vmatpush1.bf16.msra.mxu0 0
        %1312 = vmatprep.subr.bf16.mxu0 0
        %1313 = vmatpush1.bf16.msra.mxu0 0
        %1314 = vmatprep.subr.bf16.mxu0 0
        %1315 = vmatpush1.bf16.msra.mxu0 0
        %1316 = vmatprep.subr.bf16.mxu0 0
        %1317 = vmatpush1.bf16.msra.mxu0 0
        %1318 = vmatprep.subr.bf16.mxu0 0
        %1319 = vmatpush1.bf16.msra.mxu0 0
        %1320 = vmatprep.subr.bf16.mxu0 0
        %1321 = vmatpush1.bf16.msra.mxu0 0
        %1322 = vmatprep.subr.bf16.mxu0 0
        %1323 = vmatpush1.bf16.msra.mxu0 0
        %1324 = vmatprep.subr.bf16.mxu0 0
        %1325 = vmatpush1.bf16.msra.mxu0 0
        %1326 = vmatprep.subr.bf16.mxu0 0
        %1327 = vmatpush1.bf16.msra.mxu0 0
        %1328 = vmatprep.mubr.bf16.mxu0 0
        %1329 = vmatmul.mubr.bf16.gmra.mrb[0].mxu0 %v702
        %v1330 = vpop.f32.mrb[0].mxu0
        %v1331 = vadd.f32 %v410, %v1330
        %v1332 = vpop.f32.mrb[0].mxu0
        %v1333 = vadd.f32 %v410, %v1332
        %v1334 = vpop.f32.mrb[0].mxu0
        %v1335 = vpop.f32.mrb[0].mxu0
        %1336 = vdwg.mxu0
        %1337 = vmatprep.subr.bf16.mxu0 %v631
        %1338 = vmatpush1.bf16.msra.mxu0 %v630
        %1339 = vmatprep.subr.bf16.mxu0 %v790
        %1340 = vmatpush1.bf16.msra.mxu0 %v787
        %1341 = vmatprep.subr.bf16.mxu0 0
        %1342 = vmatpush1.bf16.msra.mxu0 0
        %1343 = vmatprep.subr.bf16.mxu0 0
        %1344 = vmatpush1.bf16.msra.mxu0 0
        %1345 = vmatprep.subr.bf16.mxu0 0
        %1346 = vmatpush1.bf16.msra.mxu0 0
        %1347 = vmatprep.subr.bf16.mxu0 0
        %1348 = vmatpush1.bf16.msra.mxu0 0
        %1349 = vmatprep.subr.bf16.mxu0 0
        %1350 = vmatpush1.bf16.msra.mxu0 0
        %1351 = vmatprep.subr.bf16.mxu0 0
        %1352 = vmatpush1.bf16.msra.mxu0 0
        %1353 = vmatprep.subr.bf16.mxu0 0
        %1354 = vmatpush1.bf16.msra.mxu0 0
        %1355 = vmatprep.subr.bf16.mxu0 0
        %1356 = vmatpush1.bf16.msra.mxu0 0
        %1357 = vmatprep.subr.bf16.mxu0 0
        %1358 = vmatpush1.bf16.msra.mxu0 0
        %1359 = vmatprep.subr.bf16.mxu0 0
        %1360 = vmatpush1.bf16.msra.mxu0 0
        %1361 = vmatprep.subr.bf16.mxu0 0
        %1362 = vmatpush1.bf16.msra.mxu0 0
        %1363 = vmatprep.subr.bf16.mxu0 0
        %1364 = vmatpush1.bf16.msra.mxu0 0
        %1365 = vmatprep.subr.bf16.mxu0 0
        %1366 = vmatpush1.bf16.msra.mxu0 0
        %1367 = vmatprep.subr.bf16.mxu0 0
        %1368 = vmatpush1.bf16.msra.mxu0 0
        %1369 = vmatprep.mubr.bf16.mxu0 0
        %1370 = vmatmul.mubr.bf16.gmra.mrb[0].mxu0 %v702
        %v1371 = vpop.f32.mrb[0].mxu0
        %v1372 = vadd.f32 %v410, %v1371
        %v1373 = vpop.f32.mrb[0].mxu0
        %v1374 = vadd.f32 %v410, %v1373
        %v1375 = vpop.f32.mrb[0].mxu0
        %v1376 = vpop.f32.mrb[0].mxu0
        %1377 = vdwg.mxu0
        %1378 = vmatprep.subr.bf16.mxu0 %v633
        %1379 = vmatpush1.bf16.msra.mxu0 %v632
        %1380 = vmatprep.subr.bf16.mxu0 %v796
        %1381 = vmatpush1.bf16.msra.mxu0 %v793
        %1382 = vmatprep.subr.bf16.mxu0 0
        %1383 = vmatpush1.bf16.msra.mxu0 0
        %1384 = vmatprep.subr.bf16.mxu0 0
        %1385 = vmatpush1.bf16.msra.mxu0 0
        %1386 = vmatprep.subr.bf16.mxu0 0
        %1387 = vmatpush1.bf16.msra.mxu0 0
        %1388 = vmatprep.subr.bf16.mxu0 0
        %1389 = vmatpush1.bf16.msra.mxu0 0
        %1390 = vmatprep.subr.bf16.mxu0 0
        %1391 = vmatpush1.bf16.msra.mxu0 0
        %1392 = vmatprep.subr.bf16.mxu0 0
        %1393 = vmatpush1.bf16.msra.mxu0 0
        %1394 = vmatprep.subr.bf16.mxu0 0
        %1395 = vmatpush1.bf16.msra.mxu0 0
        %1396 = vmatprep.subr.bf16.mxu0 0
        %1397 = vmatpush1.bf16.msra.mxu0 0
        %1398 = vmatprep.subr.bf16.mxu0 0
        %1399 = vmatpush1.bf16.msra.mxu0 0
        %1400 = vmatprep.subr.bf16.mxu0 0
        %1401 = vmatpush1.bf16.msra.mxu0 0
        %1402 = vmatprep.subr.bf16.mxu0 0
        %1403 = vmatpush1.bf16.msra.mxu0 0
        %1404 = vmatprep.subr.bf16.mxu0 0
        %1405 = vmatpush1.bf16.msra.mxu0 0
        %1406 = vmatprep.subr.bf16.mxu0 0
        %1407 = vmatpush1.bf16.msra.mxu0 0
        %1408 = vmatprep.subr.bf16.mxu0 0
        %1409 = vmatpush1.bf16.msra.mxu0 0
        %1410 = vmatprep.mubr.bf16.mxu0 0
        %1411 = vmatmul.mubr.bf16.gmra.mrb[0].mxu0 %v702
        %v1412 = vpop.f32.mrb[0].mxu0
        %v1413 = vadd.f32 %v410, %v1412
        %v1414 = vpop.f32.mrb[0].mxu0
        %v1415 = vadd.f32 %v410, %v1414
        %v1416 = vpop.f32.mrb[0].mxu0
        %v1417 = vpop.f32.mrb[0].mxu0
        %1418 = vdwg.mxu0
        %1419 = vmatprep.subr.bf16.mxu0 %v635
        %1420 = vmatpush1.bf16.msra.mxu0 %v634
        %1421 = vmatprep.subr.bf16.mxu0 %v802
        %1422 = vmatpush1.bf16.msra.mxu0 %v799
        %1423 = vmatprep.subr.bf16.mxu0 0
        %1424 = vmatpush1.bf16.msra.mxu0 0
        %1425 = vmatprep.subr.bf16.mxu0 0
        %1426 = vmatpush1.bf16.msra.mxu0 0
        %1427 = vmatprep.subr.bf16.mxu0 0
        %1428 = vmatpush1.bf16.msra.mxu0 0
        %1429 = vmatprep.subr.bf16.mxu0 0
        %1430 = vmatpush1.bf16.msra.mxu0 0
        %1431 = vmatprep.subr.bf16.mxu0 0
        %1432 = vmatpush1.bf16.msra.mxu0 0
        %1433 = vmatprep.subr.bf16.mxu0 0
        %1434 = vmatpush1.bf16.msra.mxu0 0
        %1435 = vmatprep.subr.bf16.mxu0 0
        %1436 = vmatpush1.bf16.msra.mxu0 0
        %1437 = vmatprep.subr.bf16.mxu0 0
        %1438 = vmatpush1.bf16.msra.mxu0 0
        %1439 = vmatprep.subr.bf16.mxu0 0
        %1440 = vmatpush1.bf16.msra.mxu0 0
        %1441 = vmatprep.subr.bf16.mxu0 0
        %1442 = vmatpush1.bf16.msra.mxu0 0
        %1443 = vmatprep.subr.bf16.mxu0 0
        %1444 = vmatpush1.bf16.msra.mxu0 0
        %1445 = vmatprep.subr.bf16.mxu0 0
        %1446 = vmatpush1.bf16.msra.mxu0 0
        %1447 = vmatprep.subr.bf16.mxu0 0
        %1448 = vmatpush1.bf16.msra.mxu0 0
        %1449 = vmatprep.subr.bf16.mxu0 0
        %1450 = vmatpush1.bf16.msra.mxu0 0
        %1451 = vmatprep.mubr.bf16.mxu0 0
        %1452 = vmatmul.mubr.bf16.gmra.mrb[0].mxu0 %v702
        %v1453 = vpop.f32.mrb[0].mxu0
        %v1454 = vadd.f32 %v410, %v1453
        %v1455 = vpop.f32.mrb[0].mxu0
        %v1456 = vadd.f32 %v410, %v1455
        %v1457 = vpop.f32.mrb[0].mxu0
        %v1458 = vpop.f32.mrb[0].mxu0
        %1459 = vdwg.mxu0
        %v1460 = vxor.u32 %v839, 2147483648
        %v1461 = vxor.u32 %v841, 2147483648
        %v1462 = vxor.u32 %v880, 2147483648
        %v1463 = vxor.u32 %v882, 2147483648
        %v1464 = vxor.u32 %v921, 2147483648
        %v1465 = vxor.u32 %v923, 2147483648
        %v1466 = vxor.u32 %v962, 2147483648
        %v1467 = vxor.u32 %v964, 2147483648
        %v1468 = vxor.u32 %v1003, 2147483648
        %v1469 = vxor.u32 %v1005, 2147483648
        %v1470 = vxor.u32 %v1044, 2147483648
        %v1471 = vxor.u32 %v1046, 2147483648
        %v1472 = vxor.u32 %v1085, 2147483648
        %v1473 = vxor.u32 %v1087, 2147483648
        %v1474 = vxor.u32 %v1126, 2147483648
        %v1475 = vxor.u32 %v1128, 2147483648
        %v1476 = vxor.u32 %v1167, 2147483648
        %v1477 = vxor.u32 %v1169, 2147483648
        %v1478 = vxor.u32 %v1208, 2147483648
        %v1479 = vxor.u32 %v1210, 2147483648
        %v1480 = vxor.u32 %v1249, 2147483648
        %v1481 = vxor.u32 %v1251, 2147483648
        %v1482 = vxor.u32 %v1290, 2147483648
        %v1483 = vxor.u32 %v1292, 2147483648
        %v1484 = vxor.u32 %v1331, 2147483648
        %v1485 = vxor.u32 %v1333, 2147483648
        %v1486 = vxor.u32 %v1372, 2147483648
        %v1487 = vxor.u32 %v1374, 2147483648
        %v1488 = vxor.u32 %v1413, 2147483648
        %v1489 = vxor.u32 %v1415, 2147483648
        %v1490 = vxor.u32 %v1454, 2147483648
        %v1491 = vxor.u32 %v1456, 2147483648
        %v1492 = vmul.f32 %v1460, 1.442695
        %v1493 = vpow.pop %v1492
        %v1494 = vmul.f32 %v1461, 1.442695
        %v1495 = vpow.pop %v1494
        %v1496 = vmul.f32 %v1462, 1.442695
        %v1497 = vpow.pop %v1496
        %v1498 = vmul.f32 %v1463, 1.442695
        %v1499 = vpow.pop %v1498
        %v1500 = vmul.f32 %v1464, 1.442695
        %v1501 = vpow.pop %v1500
        %v1502 = vmul.f32 %v1465, 1.442695
        %v1503 = vpow.pop %v1502
        %v1504 = vmul.f32 %v1466, 1.442695
        %v1505 = vpow.pop %v1504
        %v1506 = vmul.f32 %v1467, 1.442695
        %v1507 = vpow.pop %v1506
        %v1508 = vmul.f32 %v1468, 1.442695
        %v1509 = vpow.pop %v1508
        %v1510 = vmul.f32 %v1469, 1.442695
        %v1511 = vpow.pop %v1510
        %v1512 = vmul.f32 %v1470, 1.442695
        %v1513 = vpow.pop %v1512
        %v1514 = vmul.f32 %v1471, 1.442695
        %v1515 = vpow.pop %v1514
        %v1516 = vmul.f32 %v1472, 1.442695
        %v1517 = vpow.pop %v1516
        %v1518 = vmul.f32 %v1473, 1.442695
        %v1519 = vpow.pop %v1518
        %v1520 = vmul.f32 %v1474, 1.442695
        %v1521 = vpow.pop %v1520
        %v1522 = vmul.f32 %v1475, 1.442695
        %v1523 = vpow.pop %v1522
        %v1524 = vmul.f32 %v1476, 1.442695
        %v1525 = vpow.pop %v1524
        %v1526 = vmul.f32 %v1477, 1.442695
        %v1527 = vpow.pop %v1526
        %v1528 = vmul.f32 %v1478, 1.442695
        %v1529 = vpow.pop %v1528
        %v1530 = vmul.f32 %v1479, 1.442695
        %v1531 = vpow.pop %v1530
        %v1532 = vmul.f32 %v1480, 1.442695
        %v1533 = vpow.pop %v1532
        %v1534 = vmul.f32 %v1481, 1.442695
        %v1535 = vpow.pop %v1534
        %v1536 = vmul.f32 %v1482, 1.442695
        %v1537 = vpow.pop %v1536
        %v1538 = vmul.f32 %v1483, 1.442695
        %v1539 = vpow.pop %v1538
        %v1540 = vmul.f32 %v1484, 1.442695
        %v1541 = vpow.pop %v1540
        %v1542 = vmul.f32 %v1485, 1.442695
        %v1543 = vpow.pop %v1542
        %v1544 = vmul.f32 %v1486, 1.442695
        %v1545 = vpow.pop %v1544
        %v1546 = vmul.f32 %v1487, 1.442695
        %v1547 = vpow.pop %v1546
        %v1548 = vmul.f32 %v1488, 1.442695
        %v1549 = vpow.pop %v1548
        %v1550 = vmul.f32 %v1489, 1.442695
        %v1551 = vpow.pop %v1550
        %v1552 = vmul.f32 %v1490, 1.442695
        %v1553 = vpow.pop %v1552
        %v1554 = vmul.f32 %v1491, 1.442695
        %v1555 = vpow.pop %v1554
        %v1556 = vadd.f32 %v1493, 1.0
        %v1557 = vadd.f32 %v1495, 1.0
        %v1558 = vadd.f32 %v1497, 1.0
        %v1559 = vadd.f32 %v1499, 1.0
        %v1560 = vadd.f32 %v1501, 1.0
        %v1561 = vadd.f32 %v1503, 1.0
        %v1562 = vadd.f32 %v1505, 1.0
        %v1563 = vadd.f32 %v1507, 1.0
        %v1564 = vadd.f32 %v1509, 1.0
        %v1565 = vadd.f32 %v1511, 1.0
        %v1566 = vadd.f32 %v1513, 1.0
        %v1567 = vadd.f32 %v1515, 1.0
        %v1568 = vadd.f32 %v1517, 1.0
        %v1569 = vadd.f32 %v1519, 1.0
        %v1570 = vadd.f32 %v1521, 1.0
        %v1571 = vadd.f32 %v1523, 1.0
        %v1572 = vadd.f32 %v1525, 1.0
        %v1573 = vadd.f32 %v1527, 1.0
        %v1574 = vadd.f32 %v1529, 1.0
        %v1575 = vadd.f32 %v1531, 1.0
        %v1576 = vadd.f32 %v1533, 1.0
        %v1577 = vadd.f32 %v1535, 1.0
        %v1578 = vadd.f32 %v1537, 1.0
        %v1579 = vadd.f32 %v1539, 1.0
        %v1580 = vadd.f32 %v1541, 1.0
        %v1581 = vadd.f32 %v1543, 1.0
        %v1582 = vadd.f32 %v1545, 1.0
        %v1583 = vadd.f32 %v1547, 1.0
        %v1584 = vadd.f32 %v1549, 1.0
        %v1585 = vadd.f32 %v1551, 1.0
        %v1586 = vadd.f32 %v1553, 1.0
        %v1587 = vadd.f32 %v1555, 1.0
        %v1588 = vrcp.pop %v1556
        %v1589 = vmul.f32 1.0, %v1588
        %v1590 = vrcp.pop %v1557
        %v1591 = vmul.f32 1.0, %v1590
        %v1592 = vrcp.pop %v1558
        %v1593 = vmul.f32 1.0, %v1592
        %v1594 = vrcp.pop %v1559
        %v1595 = vmul.f32 1.0, %v1594
        %v1596 = vrcp.pop %v1560
        %v1597 = vmul.f32 1.0, %v1596
        %v1598 = vrcp.pop %v1561
        %v1599 = vmul.f32 1.0, %v1598
        %v1600 = vrcp.pop %v1562
        %v1601 = vmul.f32 1.0, %v1600
        %v1602 = vrcp.pop %v1563
        %v1603 = vmul.f32 1.0, %v1602
        %v1604 = vrcp.pop %v1564
        %v1605 = vmul.f32 1.0, %v1604
        %v1606 = vrcp.pop %v1565
        %v1607 = vmul.f32 1.0, %v1606
        %v1608 = vrcp.pop %v1566
        %v1609 = vmul.f32 1.0, %v1608
        %v1610 = vrcp.pop %v1567
        %v1611 = vmul.f32 1.0, %v1610
        %v1612 = vrcp.pop %v1568
        %v1613 = vmul.f32 1.0, %v1612
        %v1614 = vrcp.pop %v1569
        %v1615 = vmul.f32 1.0, %v1614
        %v1616 = vrcp.pop %v1570
        %v1617 = vmul.f32 1.0, %v1616
        %v1618 = vrcp.pop %v1571
        %v1619 = vmul.f32 1.0, %v1618
        %v1620 = vrcp.pop %v1572
        %v1621 = vmul.f32 1.0, %v1620
        %v1622 = vrcp.pop %v1573
        %v1623 = vmul.f32 1.0, %v1622
        %v1624 = vrcp.pop %v1574
        %v1625 = vmul.f32 1.0, %v1624
        %v1626 = vrcp.pop %v1575
        %v1627 = vmul.f32 1.0, %v1626
        %v1628 = vrcp.pop %v1576
        %v1629 = vmul.f32 1.0, %v1628
        %v1630 = vrcp.pop %v1577
        %v1631 = vmul.f32 1.0, %v1630
        %v1632 = vrcp.pop %v1578
        %v1633 = vmul.f32 1.0, %v1632
        %v1634 = vrcp.pop %v1579
        %v1635 = vmul.f32 1.0, %v1634
        %v1636 = vrcp.pop %v1580
        %v1637 = vmul.f32 1.0, %v1636
        %v1638 = vrcp.pop %v1581
        %v1639 = vmul.f32 1.0, %v1638
        %v1640 = vrcp.pop %v1582
        %v1641 = vmul.f32 1.0, %v1640
        %v1642 = vrcp.pop %v1583
        %v1643 = vmul.f32 1.0, %v1642
        %v1644 = vrcp.pop %v1584
        %v1645 = vmul.f32 1.0, %v1644
        %v1646 = vrcp.pop %v1585
        %v1647 = vmul.f32 1.0, %v1646
        %v1648 = vrcp.pop %v1586
        %v1649 = vmul.f32 1.0, %v1648
        %v1650 = vrcp.pop %v1587
        %v1651 = vmul.f32 1.0, %v1650
        %v1684 = vcombine.low %v1589, %v1591
        %v1685 = vcombine.low %v1593, %v1595
        %v1686 = vcombine.low %v1597, %v1599
        %v1687 = vcombine.low %v1601, %v1603
        %v1688 = vcombine.low %v1605, %v1607
        %v1689 = vcombine.low %v1609, %v1611
        %v1690 = vcombine.low %v1613, %v1615
        %v1691 = vcombine.low %v1617, %v1619
        %v1692 = vcombine.low %v1621, %v1623
        %v1693 = vcombine.low %v1625, %v1627
        %v1694 = vcombine.low %v1629, %v1631
        %v1695 = vcombine.low %v1633, %v1635
        %v1696 = vcombine.low %v1637, %v1639
        %v1697 = vcombine.low %v1641, %v1643
        %v1698 = vcombine.low %v1645, %v1647
        %v1699 = vcombine.low %v1649, %v1651
        %1716 = vst [vmem:[%s303] sm:$0xff] %v1684
        %1717 = vst [vmem:[%s303 + $0x8] sm:$0xff] %v1685
        %1718 = vst [vmem:[%s303 + $0x10] sm:$0xff] %v1686
        %1719 = vst [vmem:[%s303 + $0x18] sm:$0xff] %v1687
        %1720 = vst [vmem:[%s303 + $0x20] sm:$0xff] %v1688
        %1721 = vst [vmem:[%s303 + $0x28] sm:$0xff] %v1689
        %1722 = vst [vmem:[%s303 + $0x30] sm:$0xff] %v1690
        %1723 = vst [vmem:[%s303 + $0x38] sm:$0xff] %v1691
        %1724 = vst [vmem:[%s303 + $0x40] sm:$0xff] %v1692
        %1725 = vst [vmem:[%s303 + $0x48] sm:$0xff] %v1693
        %1726 = vst [vmem:[%s303 + $0x50] sm:$0xff] %v1694
        %1727 = vst [vmem:[%s303 + $0x58] sm:$0xff] %v1695
        %1728 = vst [vmem:[%s303 + $0x60] sm:$0xff] %v1696
        %1729 = vst [vmem:[%s303 + $0x68] sm:$0xff] %v1697
        %1730 = vst [vmem:[%s303 + $0x70] sm:$0xff] %v1698
        %1731 = vst [vmem:[%s303 + $0x78] sm:$0xff] %v1699
        %vm1732 = vcmp.gt.f32.partialorder %v1589, 0.5
        %vm1733 = vcmp.gt.f32.partialorder %v1591, 0.5
        %vm1734 = vcmp.gt.f32.partialorder %v1593, 0.5
        %vm1735 = vcmp.gt.f32.partialorder %v1595, 0.5
        %vm1736 = vcmp.gt.f32.partialorder %v1597, 0.5
        %vm1737 = vcmp.gt.f32.partialorder %v1599, 0.5
        %vm1738 = vcmp.gt.f32.partialorder %v1601, 0.5
        %vm1739 = vcmp.gt.f32.partialorder %v1603, 0.5
        %vm1740 = vcmp.gt.f32.partialorder %v1605, 0.5
        %vm1741 = vcmp.gt.f32.partialorder %v1607, 0.5
        %vm1742 = vcmp.gt.f32.partialorder %v1609, 0.5
        %vm1743 = vcmp.gt.f32.partialorder %v1611, 0.5
        %vm1744 = vcmp.gt.f32.partialorder %v1613, 0.5
        %vm1745 = vcmp.gt.f32.partialorder %v1615, 0.5
        %vm1746 = vcmp.gt.f32.partialorder %v1617, 0.5
        %vm1747 = vcmp.gt.f32.partialorder %v1619, 0.5
        %vm1748 = vcmp.gt.f32.partialorder %v1621, 0.5
        %vm1749 = vcmp.gt.f32.partialorder %v1623, 0.5
        %vm1750 = vcmp.gt.f32.partialorder %v1625, 0.5
        %vm1751 = vcmp.gt.f32.partialorder %v1627, 0.5
        %vm1752 = vcmp.gt.f32.partialorder %v1629, 0.5
        %vm1753 = vcmp.gt.f32.partialorder %v1631, 0.5
        %vm1754 = vcmp.gt.f32.partialorder %v1633, 0.5
        %vm1755 = vcmp.gt.f32.partialorder %v1635, 0.5
        %vm1756 = vcmp.gt.f32.partialorder %v1637, 0.5
        %vm1757 = vcmp.gt.f32.partialorder %v1639, 0.5
        %vm1758 = vcmp.gt.f32.partialorder %v1641, 0.5
        %vm1759 = vcmp.gt.f32.partialorder %v1643, 0.5
        %vm1760 = vcmp.gt.f32.partialorder %v1645, 0.5
        %vm1761 = vcmp.gt.f32.partialorder %v1647, 0.5
        %vm1762 = vcmp.gt.f32.partialorder %v1649, 0.5
        %vm1763 = vcmp.gt.f32.partialorder %v1651, 0.5
        %v1764 = vsel %vm1732, 255.0, 0.0
        %v1765 = vsel %vm1733, 255.0, 0.0
        %v1766 = vsel %vm1734, 255.0, 0.0
        %v1767 = vsel %vm1735, 255.0, 0.0
        %v1768 = vsel %vm1736, 255.0, 0.0
        %v1769 = vsel %vm1737, 255.0, 0.0
        %v1770 = vsel %vm1738, 255.0, 0.0
        %v1771 = vsel %vm1739, 255.0, 0.0
        %v1772 = vsel %vm1740, 255.0, 0.0
        %v1773 = vsel %vm1741, 255.0, 0.0
        %v1774 = vsel %vm1742, 255.0, 0.0
        %v1775 = vsel %vm1743, 255.0, 0.0
        %v1776 = vsel %vm1744, 255.0, 0.0
        %v1777 = vsel %vm1745, 255.0, 0.0
        %v1778 = vsel %vm1746, 255.0, 0.0
        %v1779 = vsel %vm1747, 255.0, 0.0
        %v1780 = vsel %vm1748, 255.0, 0.0
        %v1781 = vsel %vm1749, 255.0, 0.0
        %v1782 = vsel %vm1750, 255.0, 0.0
        %v1783 = vsel %vm1751, 255.0, 0.0
        %v1784 = vsel %vm1752, 255.0, 0.0
        %v1785 = vsel %vm1753, 255.0, 0.0
        %v1786 = vsel %vm1754, 255.0, 0.0
        %v1787 = vsel %vm1755, 255.0, 0.0
        %v1788 = vsel %vm1756, 255.0, 0.0
        %v1789 = vsel %vm1757, 255.0, 0.0
        %v1790 = vsel %vm1758, 255.0, 0.0
        %v1791 = vsel %vm1759, 255.0, 0.0
        %v1792 = vsel %vm1760, 255.0, 0.0
        %v1793 = vsel %vm1761, 255.0, 0.0
        %v1794 = vsel %vm1762, 255.0, 0.0
        %v1795 = vsel %vm1763, 255.0, 0.0
        %v1796 = vpack.c.bf16 %v1764, %v1764
        %v1797 = vpack.c.bf16 %v1765, %v1765
        %v1798 = vpack.c.bf16 %v1766, %v1766
        %v1799 = vpack.c.bf16 %v1767, %v1767
        %v1800 = vpack.c.bf16 %v1768, %v1768
        %v1801 = vpack.c.bf16 %v1769, %v1769
        %v1802 = vpack.c.bf16 %v1770, %v1770
        %v1803 = vpack.c.bf16 %v1771, %v1771
        %v1804 = vpack.c.bf16 %v1772, %v1772
        %v1805 = vpack.c.bf16 %v1773, %v1773
        %v1806 = vpack.c.bf16 %v1774, %v1774
        %v1807 = vpack.c.bf16 %v1775, %v1775
        %v1808 = vpack.c.bf16 %v1776, %v1776
        %v1809 = vpack.c.bf16 %v1777, %v1777
        %v1810 = vpack.c.bf16 %v1778, %v1778
        %v1811 = vpack.c.bf16 %v1779, %v1779
        %v1812 = vpack.c.bf16 %v1780, %v1780
        %v1813 = vpack.c.bf16 %v1781, %v1781
        %v1814 = vpack.c.bf16 %v1782, %v1782
        %v1815 = vpack.c.bf16 %v1783, %v1783
        %v1816 = vpack.c.bf16 %v1784, %v1784
        %v1817 = vpack.c.bf16 %v1785, %v1785
        %v1818 = vpack.c.bf16 %v1786, %v1786
        %v1819 = vpack.c.bf16 %v1787, %v1787
        %v1820 = vpack.c.bf16 %v1788, %v1788
        %v1821 = vpack.c.bf16 %v1789, %v1789
        %v1822 = vpack.c.bf16 %v1790, %v1790
        %v1823 = vpack.c.bf16 %v1791, %v1791
        %v1824 = vpack.c.bf16 %v1792, %v1792
        %v1825 = vpack.c.bf16 %v1793, %v1793
        %v1826 = vpack.c.bf16 %v1794, %v1794
        %v1827 = vpack.c.bf16 %v1795, %v1795
        %v1860 = vcombine.low %v1796, %v1797
        %v1861 = vcombine.low %v1798, %v1799
        %v1863 = vunpack.c.l.s4 1983009808
        %v1864 = vunpack.c.0.s8 %v1863
        %v1865 = vlaneseq
        %v1866 = vshrl.u32 %v1865, 7
        %v1867 = vsub.s32 %v1864, %v1866
        %v1868 = vrot.slane %v1860, %v1867
        %v1870 = vunpack.c.l.s4 1983009808
        %v1871 = vunpack.c.0.s8 %v1870
        %v1872 = vlaneseq
        %v1873 = vshrl.u32 %v1872, 7
        %v1874 = vsub.s32 %v1871, %v1873
        %v1875 = vrot.slane %v1861, %v1874
        %v1876 = vcombine.low %v1868, %v1875
        %v1877 = vcombine.low %v1800, %v1801
        %v1878 = vcombine.low %v1802, %v1803
        %v1880 = vunpack.c.l.s4 1983009808
        %v1881 = vunpack.c.0.s8 %v1880
        %v1882 = vlaneseq
        %v1883 = vshrl.u32 %v1882, 7
        %v1884 = vsub.s32 %v1881, %v1883
        %v1885 = vrot.slane %v1877, %v1884
        %v1887 = vunpack.c.l.s4 1983009808
        %v1888 = vunpack.c.0.s8 %v1887
        %v1889 = vlaneseq
        %v1890 = vshrl.u32 %v1889, 7
        %v1891 = vsub.s32 %v1888, %v1890
        %v1892 = vrot.slane %v1878, %v1891
        %v1893 = vcombine.low %v1885, %v1892
        %v1894 = vcombine.low %v1804, %v1805
        %v1895 = vcombine.low %v1806, %v1807
        %v1897 = vunpack.c.l.s4 1983009808
        %v1898 = vunpack.c.0.s8 %v1897
        %v1899 = vlaneseq
        %v1900 = vshrl.u32 %v1899, 7
        %v1901 = vsub.s32 %v1898, %v1900
        %v1902 = vrot.slane %v1894, %v1901
        %v1904 = vunpack.c.l.s4 1983009808
        %v1905 = vunpack.c.0.s8 %v1904
        %v1906 = vlaneseq
        %v1907 = vshrl.u32 %v1906, 7
        %v1908 = vsub.s32 %v1905, %v1907
        %v1909 = vrot.slane %v1895, %v1908
        %v1910 = vcombine.low %v1902, %v1909
        %v1911 = vcombine.low %v1808, %v1809
        %v1912 = vcombine.low %v1810, %v1811
        %v1914 = vunpack.c.l.s4 1983009808
        %v1915 = vunpack.c.0.s8 %v1914
        %v1916 = vlaneseq
        %v1917 = vshrl.u32 %v1916, 7
        %v1918 = vsub.s32 %v1915, %v1917
        %v1919 = vrot.slane %v1911, %v1918
        %v1921 = vunpack.c.l.s4 1983009808
        %v1922 = vunpack.c.0.s8 %v1921
        %v1923 = vlaneseq
        %v1924 = vshrl.u32 %v1923, 7
        %v1925 = vsub.s32 %v1922, %v1924
        %v1926 = vrot.slane %v1912, %v1925
        %v1927 = vcombine.low %v1919, %v1926
        %v1928 = vcombine.low %v1812, %v1813
        %v1929 = vcombine.low %v1814, %v1815
        %v1931 = vunpack.c.l.s4 1983009808
        %v1932 = vunpack.c.0.s8 %v1931
        %v1933 = vlaneseq
        %v1934 = vshrl.u32 %v1933, 7
        %v1935 = vsub.s32 %v1932, %v1934
        %v1936 = vrot.slane %v1928, %v1935
        %v1938 = vunpack.c.l.s4 1983009808
        %v1939 = vunpack.c.0.s8 %v1938
        %v1940 = vlaneseq
        %v1941 = vshrl.u32 %v1940, 7
        %v1942 = vsub.s32 %v1939, %v1941
        %v1943 = vrot.slane %v1929, %v1942
        %v1944 = vcombine.low %v1936, %v1943
        %v1945 = vcombine.low %v1816, %v1817
        %v1946 = vcombine.low %v1818, %v1819
        %v1948 = vunpack.c.l.s4 1983009808
        %v1949 = vunpack.c.0.s8 %v1948
        %v1950 = vlaneseq
        %v1951 = vshrl.u32 %v1950, 7
        %v1952 = vsub.s32 %v1949, %v1951
        %v1953 = vrot.slane %v1945, %v1952
        %v1955 = vunpack.c.l.s4 1983009808
        %v1956 = vunpack.c.0.s8 %v1955
        %v1957 = vlaneseq
        %v1958 = vshrl.u32 %v1957, 7
        %v1959 = vsub.s32 %v1956, %v1958
        %v1960 = vrot.slane %v1946, %v1959
        %v1961 = vcombine.low %v1953, %v1960
        %v1962 = vcombine.low %v1820, %v1821
        %v1963 = vcombine.low %v1822, %v1823
        %v1965 = vunpack.c.l.s4 1983009808
        %v1966 = vunpack.c.0.s8 %v1965
        %v1967 = vlaneseq
        %v1968 = vshrl.u32 %v1967, 7
        %v1969 = vsub.s32 %v1966, %v1968
        %v1970 = vrot.slane %v1962, %v1969
        %v1972 = vunpack.c.l.s4 1983009808
        %v1973 = vunpack.c.0.s8 %v1972
        %v1974 = vlaneseq
        %v1975 = vshrl.u32 %v1974, 7
        %v1976 = vsub.s32 %v1973, %v1975
        %v1977 = vrot.slane %v1963, %v1976
        %v1978 = vcombine.low %v1970, %v1977
        %v1979 = vcombine.low %v1824, %v1825
        %v1980 = vcombine.low %v1826, %v1827
        %v1982 = vunpack.c.l.s4 1983009808
        %v1983 = vunpack.c.0.s8 %v1982
        %v1984 = vlaneseq
        %v1985 = vshrl.u32 %v1984, 7
        %v1986 = vsub.s32 %v1983, %v1985
        %v1987 = vrot.slane %v1979, %v1986
        %v1989 = vunpack.c.l.s4 1983009808
        %v1990 = vunpack.c.0.s8 %v1989
        %v1991 = vlaneseq
        %v1992 = vshrl.u32 %v1991, 7
        %v1993 = vsub.s32 %v1990, %v1992
        %v1994 = vrot.slane %v1980, %v1993
        %v1995 = vcombine.low %v1987, %v1994
        %2004 = vst [vmem:[%s310] sm:$0xff] %v1876
        %2005 = vst [vmem:[%s310 + $0x8] sm:$0xff] %v1893
        %2006 = vst [vmem:[%s310 + $0x10] sm:$0xff] %v1910
        %2007 = vst [vmem:[%s310 + $0x18] sm:$0xff] %v1927
        %2008 = vst [vmem:[%s310 + $0x20] sm:$0xff] %v1944
        %2009 = vst [vmem:[%s310 + $0x28] sm:$0xff] %v1961
        %2010 = vst [vmem:[%s310 + $0x30] sm:$0xff] %v1978
        %2011 = vst [vmem:[%s310 + $0x38] sm:$0xff] %v1995
        %v2012 = vld [vmem:[%s336] sm:$0xff]
        %v2013 = vld [vmem:[%s336 + $0x8] sm:$0xff]
        %v2014 = vld [vmem:[%s336 + $0x10] sm:$0xff]
        %v2015 = vld [vmem:[%s336 + $0x18] sm:$0xff]
        %v2016 = vld [vmem:[%s336 + $0x20] sm:$0xff]
        %v2017 = vld [vmem:[%s336 + $0x28] sm:$0xff]
        %v2018 = vld [vmem:[%s336 + $0x30] sm:$0xff]
        %v2019 = vld [vmem:[%s336 + $0x38] sm:$0xff]
        %v2020 = vunpack.c.l.bf16 %v2012
        %v2021 = vunpack.c.h.bf16 %v2012
        %v2022 = vunpack.c.l.bf16 %v2013
        %v2023 = vunpack.c.h.bf16 %v2013
        %v2024 = vunpack.c.l.bf16 %v2014
        %v2025 = vunpack.c.h.bf16 %v2014
        %v2026 = vunpack.c.l.bf16 %v2015
        %v2027 = vunpack.c.h.bf16 %v2015
        %v2028 = vunpack.c.l.bf16 %v2016
        %v2029 = vunpack.c.h.bf16 %v2016
        %v2030 = vunpack.c.l.bf16 %v2017
        %v2031 = vunpack.c.h.bf16 %v2017
        %v2032 = vunpack.c.l.bf16 %v2018
        %v2033 = vunpack.c.h.bf16 %v2018
        %v2034 = vunpack.c.l.bf16 %v2019
        %v2035 = vunpack.c.h.bf16 %v2019
        %v2036 = vmax.f32 %v839, 0.0
        %v2037 = vmax.f32 %v841, 0.0
        %v2038 = vmax.f32 %v880, 0.0
        %v2039 = vmax.f32 %v882, 0.0
        %v2040 = vmax.f32 %v921, 0.0
        %v2041 = vmax.f32 %v923, 0.0
        %v2042 = vmax.f32 %v962, 0.0
        %v2043 = vmax.f32 %v964, 0.0
        %v2044 = vmax.f32 %v1003, 0.0
        %v2045 = vmax.f32 %v1005, 0.0
        %v2046 = vmax.f32 %v1044, 0.0
        %v2047 = vmax.f32 %v1046, 0.0
        %v2048 = vmax.f32 %v1085, 0.0
        %v2049 = vmax.f32 %v1087, 0.0
        %v2050 = vmax.f32 %v1126, 0.0
        %v2051 = vmax.f32 %v1128, 0.0
        %v2052 = vmax.f32 %v1167, 0.0
        %v2053 = vmax.f32 %v1169, 0.0
        %v2054 = vmax.f32 %v1208, 0.0
        %v2055 = vmax.f32 %v1210, 0.0
        %v2056 = vmax.f32 %v1249, 0.0
        %v2057 = vmax.f32 %v1251, 0.0
        %v2058 = vmax.f32 %v1290, 0.0
        %v2059 = vmax.f32 %v1292, 0.0
        %v2060 = vmax.f32 %v1331, 0.0
        %v2061 = vmax.f32 %v1333, 0.0
        %v2062 = vmax.f32 %v1372, 0.0
        %v2063 = vmax.f32 %v1374, 0.0
        %v2064 = vmax.f32 %v1413, 0.0
        %v2065 = vmax.f32 %v1415, 0.0
        %v2066 = vmax.f32 %v1454, 0.0
        %v2067 = vmax.f32 %v1456, 0.0
        %v2084 = vcombine.high %v2020, %v2020
        %v2085 = vcombine.high %v2021, %v2021
        %v2086 = vcombine.high %v2022, %v2022
        %v2087 = vcombine.high %v2023, %v2023
        %v2088 = vcombine.high %v2024, %v2024
        %v2089 = vcombine.high %v2025, %v2025
        %v2090 = vcombine.high %v2026, %v2026
        %v2091 = vcombine.high %v2027, %v2027
        %v2092 = vcombine.high %v2028, %v2028
        %v2093 = vcombine.high %v2029, %v2029
        %v2094 = vcombine.high %v2030, %v2030
        %v2095 = vcombine.high %v2031, %v2031
        %v2096 = vcombine.high %v2032, %v2032
        %v2097 = vcombine.high %v2033, %v2033
        %v2098 = vcombine.high %v2034, %v2034
        %v2099 = vcombine.high %v2035, %v2035
        %v2116 = vmul.f32 %v839, %v2020
        %v2117 = vmul.f32 %v841, %v2084
        %v2118 = vmul.f32 %v880, %v2021
        %v2119 = vmul.f32 %v882, %v2085
        %v2120 = vmul.f32 %v921, %v2022
        %v2121 = vmul.f32 %v923, %v2086
        %v2122 = vmul.f32 %v962, %v2023
        %v2123 = vmul.f32 %v964, %v2087
        %v2124 = vmul.f32 %v1003, %v2024
        %v2125 = vmul.f32 %v1005, %v2088
        %v2126 = vmul.f32 %v1044, %v2025
        %v2127 = vmul.f32 %v1046, %v2089
        %v2128 = vmul.f32 %v1085, %v2026
        %v2129 = vmul.f32 %v1087, %v2090
        %v2130 = vmul.f32 %v1126, %v2027
        %v2131 = vmul.f32 %v1128, %v2091
        %v2132 = vmul.f32 %v1167, %v2028
        %v2133 = vmul.f32 %v1169, %v2092
        %v2134 = vmul.f32 %v1208, %v2029
        %v2135 = vmul.f32 %v1210, %v2093
        %v2136 = vmul.f32 %v1249, %v2030
        %v2137 = vmul.f32 %v1251, %v2094
        %v2138 = vmul.f32 %v1290, %v2031
        %v2139 = vmul.f32 %v1292, %v2095
        %v2140 = vmul.f32 %v1331, %v2032
        %v2141 = vmul.f32 %v1333, %v2096
        %v2142 = vmul.f32 %v1372, %v2033
        %v2143 = vmul.f32 %v1374, %v2097
        %v2144 = vmul.f32 %v1413, %v2034
        %v2145 = vmul.f32 %v1415, %v2098
        %v2146 = vmul.f32 %v1454, %v2035
        %v2147 = vmul.f32 %v1456, %v2099
        %v2148 = vsub.f32 %v2036, %v2116
        %v2149 = vsub.f32 %v2037, %v2117
        %v2150 = vsub.f32 %v2038, %v2118
        %v2151 = vsub.f32 %v2039, %v2119
        %v2152 = vsub.f32 %v2040, %v2120
        %v2153 = vsub.f32 %v2041, %v2121
        %v2154 = vsub.f32 %v2042, %v2122
        %v2155 = vsub.f32 %v2043, %v2123
        %v2156 = vsub.f32 %v2044, %v2124
        %v2157 = vsub.f32 %v2045, %v2125
        %v2158 = vsub.f32 %v2046, %v2126
        %v2159 = vsub.f32 %v2047, %v2127
        %v2160 = vsub.f32 %v2048, %v2128
        %v2161 = vsub.f32 %v2049, %v2129
        %v2162 = vsub.f32 %v2050, %v2130
        %v2163 = vsub.f32 %v2051, %v2131
        %v2164 = vsub.f32 %v2052, %v2132
        %v2165 = vsub.f32 %v2053, %v2133
        %v2166 = vsub.f32 %v2054, %v2134
        %v2167 = vsub.f32 %v2055, %v2135
        %v2168 = vsub.f32 %v2056, %v2136
        %v2169 = vsub.f32 %v2057, %v2137
        %v2170 = vsub.f32 %v2058, %v2138
        %v2171 = vsub.f32 %v2059, %v2139
        %v2172 = vsub.f32 %v2060, %v2140
        %v2173 = vsub.f32 %v2061, %v2141
        %v2174 = vsub.f32 %v2062, %v2142
        %v2175 = vsub.f32 %v2063, %v2143
        %v2176 = vsub.f32 %v2064, %v2144
        %v2177 = vsub.f32 %v2065, %v2145
        %v2178 = vsub.f32 %v2066, %v2146
        %v2179 = vsub.f32 %v2067, %v2147
        %v2180 = vand.u32 2147483647, %v839
        %v2181 = vand.u32 2147483647, %v841
        %v2182 = vand.u32 2147483647, %v880
        %v2183 = vand.u32 2147483647, %v882
        %v2184 = vand.u32 2147483647, %v921
        %v2185 = vand.u32 2147483647, %v923
        %v2186 = vand.u32 2147483647, %v962
        %v2187 = vand.u32 2147483647, %v964
        %v2188 = vand.u32 2147483647, %v1003
        %v2189 = vand.u32 2147483647, %v1005
        %v2190 = vand.u32 2147483647, %v1044
        %v2191 = vand.u32 2147483647, %v1046
        %v2192 = vand.u32 2147483647, %v1085
        %v2193 = vand.u32 2147483647, %v1087
        %v2194 = vand.u32 2147483647, %v1126
        %v2195 = vand.u32 2147483647, %v1128
        %v2196 = vand.u32 2147483647, %v1167
        %v2197 = vand.u32 2147483647, %v1169
        %v2198 = vand.u32 2147483647, %v1208
        %v2199 = vand.u32 2147483647, %v1210
        %v2200 = vand.u32 2147483647, %v1249
        %v2201 = vand.u32 2147483647, %v1251
        %v2202 = vand.u32 2147483647, %v1290
        %v2203 = vand.u32 2147483647, %v1292
        %v2204 = vand.u32 2147483647, %v1331
        %v2205 = vand.u32 2147483647, %v1333
        %v2206 = vand.u32 2147483647, %v1372
        %v2207 = vand.u32 2147483647, %v1374
        %v2208 = vand.u32 2147483647, %v1413
        %v2209 = vand.u32 2147483647, %v1415
        %v2210 = vand.u32 2147483647, %v1454
        %v2211 = vand.u32 2147483647, %v1456
        %v2212 = vsub.f32 0.0, %v2180
        %v2213 = vsub.f32 0.0, %v2181
        %v2214 = vsub.f32 0.0, %v2182
        %v2215 = vsub.f32 0.0, %v2183
        %v2216 = vsub.f32 0.0, %v2184
        %v2217 = vsub.f32 0.0, %v2185
        %v2218 = vsub.f32 0.0, %v2186
        %v2219 = vsub.f32 0.0, %v2187
        %v2220 = vsub.f32 0.0, %v2188
        %v2221 = vsub.f32 0.0, %v2189
        %v2222 = vsub.f32 0.0, %v2190
        %v2223 = vsub.f32 0.0, %v2191
        %v2224 = vsub.f32 0.0, %v2192
        %v2225 = vsub.f32 0.0, %v2193
        %v2226 = vsub.f32 0.0, %v2194
        %v2227 = vsub.f32 0.0, %v2195
        %v2228 = vsub.f32 0.0, %v2196
        %v2229 = vsub.f32 0.0, %v2197
        %v2230 = vsub.f32 0.0, %v2198
        %v2231 = vsub.f32 0.0, %v2199
        %v2232 = vsub.f32 0.0, %v2200
        %v2233 = vsub.f32 0.0, %v2201
        %v2234 = vsub.f32 0.0, %v2202
        %v2235 = vsub.f32 0.0, %v2203
        %v2236 = vsub.f32 0.0, %v2204
        %v2237 = vsub.f32 0.0, %v2205
        %v2238 = vsub.f32 0.0, %v2206
        %v2239 = vsub.f32 0.0, %v2207
        %v2240 = vsub.f32 0.0, %v2208
        %v2241 = vsub.f32 0.0, %v2209
        %v2242 = vsub.f32 0.0, %v2210
        %v2243 = vsub.f32 0.0, %v2211
        %v2244 = vmul.f32 %v2212, 1.442695
        %v2245 = vpow.pop %v2244
        %v2246 = vmul.f32 %v2213, 1.442695
        %v2247 = vpow.pop %v2246
        %v2248 = vmul.f32 %v2214, 1.442695
        %v2249 = vpow.pop %v2248
        %v2250 = vmul.f32 %v2215, 1.442695
        %v2251 = vpow.pop %v2250
        %v2252 = vmul.f32 %v2216, 1.442695
        %v2253 = vpow.pop %v2252
        %v2254 = vmul.f32 %v2217, 1.442695
        %v2255 = vpow.pop %v2254
        %v2256 = vmul.f32 %v2218, 1.442695
        %v2257 = vpow.pop %v2256
        %v2258 = vmul.f32 %v2219, 1.442695
        %v2259 = vpow.pop %v2258
        %v2260 = vmul.f32 %v2220, 1.442695
        %v2261 = vpow.pop %v2260
        %v2262 = vmul.f32 %v2221, 1.442695
        %v2263 = vpow.pop %v2262
        %v2264 = vmul.f32 %v2222, 1.442695
        %v2265 = vpow.pop %v2264
        %v2266 = vmul.f32 %v2223, 1.442695
        %v2267 = vpow.pop %v2266
        %v2268 = vmul.f32 %v2224, 1.442695
        %v2269 = vpow.pop %v2268
        %v2270 = vmul.f32 %v2225, 1.442695
        %v2271 = vpow.pop %v2270
        %v2272 = vmul.f32 %v2226, 1.442695
        %v2273 = vpow.pop %v2272
        %v2274 = vmul.f32 %v2227, 1.442695
        %v2275 = vpow.pop %v2274
        %v2276 = vmul.f32 %v2228, 1.442695
        %v2277 = vpow.pop %v2276
        %v2278 = vmul.f32 %v2229, 1.442695
        %v2279 = vpow.pop %v2278
        %v2280 = vmul.f32 %v2230, 1.442695
        %v2281 = vpow.pop %v2280
        %v2282 = vmul.f32 %v2231, 1.442695
        %v2283 = vpow.pop %v2282
        %v2284 = vmul.f32 %v2232, 1.442695
        %v2285 = vpow.pop %v2284
        %v2286 = vmul.f32 %v2233, 1.442695
        %v2287 = vpow.pop %v2286
        %v2288 = vmul.f32 %v2234, 1.442695
        %v2289 = vpow.pop %v2288
        %v2290 = vmul.f32 %v2235, 1.442695
        %v2291 = vpow.pop %v2290
        %v2292 = vmul.f32 %v2236, 1.442695
        %v2293 = vpow.pop %v2292
        %v2294 = vmul.f32 %v2237, 1.442695
        %v2295 = vpow.pop %v2294
        %v2296 = vmul.f32 %v2238, 1.442695
        %v2297 = vpow.pop %v2296
        %v2298 = vmul.f32 %v2239, 1.442695
        %v2299 = vpow.pop %v2298
        %v2300 = vmul.f32 %v2240, 1.442695
        %v2301 = vpow.pop %v2300
        %v2302 = vmul.f32 %v2241, 1.442695
        %v2303 = vpow.pop %v2302
        %v2304 = vmul.f32 %v2242, 1.442695
        %v2305 = vpow.pop %v2304
        %v2306 = vmul.f32 %v2243, 1.442695
        %v2307 = vpow.pop %v2306
        %v2308 = vadd.f32 %v2245, 1.0
        %v2309 = vlog2.pop %v2308
        %v2310 = vmul.f32 %v2309, 0.6931472
        %v2311 = vmul.f32 -0.5, %v2245
        %v2312 = vadd.f32 %v2311, 1.0
        %v2313 = vmul.f32 %v2312, %v2245
        %v2314 = vand.u32 2147483647, %v2245
        %vm2315 = vcmp.lt.f32.partialorder %v2314, 0.0004427343
        %v2316 = vsel %vm2315, %v2313, %v2310
        %v2317 = vadd.f32 %v2247, 1.0
        %v2318 = vlog2.pop %v2317
        %v2319 = vmul.f32 %v2318, 0.6931472
        %v2320 = vmul.f32 -0.5, %v2247
        %v2321 = vadd.f32 %v2320, 1.0
        %v2322 = vmul.f32 %v2321, %v2247
        %v2323 = vand.u32 2147483647, %v2247
        %vm2324 = vcmp.lt.f32.partialorder %v2323, 0.0004427343
        %v2325 = vsel %vm2324, %v2322, %v2319
        %v2326 = vadd.f32 %v2249, 1.0
        %v2327 = vlog2.pop %v2326
        %v2328 = vmul.f32 %v2327, 0.6931472
        %v2329 = vmul.f32 -0.5, %v2249
        %v2330 = vadd.f32 %v2329, 1.0
        %v2331 = vmul.f32 %v2330, %v2249
        %v2332 = vand.u32 2147483647, %v2249
        %vm2333 = vcmp.lt.f32.partialorder %v2332, 0.0004427343
        %v2334 = vsel %vm2333, %v2331, %v2328
        %v2335 = vadd.f32 %v2251, 1.0
        %v2336 = vlog2.pop %v2335
        %v2337 = vmul.f32 %v2336, 0.6931472
        %v2338 = vmul.f32 -0.5, %v2251
        %v2339 = vadd.f32 %v2338, 1.0
        %v2340 = vmul.f32 %v2339, %v2251
        %v2341 = vand.u32 2147483647, %v2251
        %vm2342 = vcmp.lt.f32.partialorder %v2341, 0.0004427343
        %v2343 = vsel %vm2342, %v2340, %v2337
        %v2344 = vadd.f32 %v2253, 1.0
        %v2345 = vlog2.pop %v2344
        %v2346 = vmul.f32 %v2345, 0.6931472
        %v2347 = vmul.f32 -0.5, %v2253
        %v2348 = vadd.f32 %v2347, 1.0
        %v2349 = vmul.f32 %v2348, %v2253
        %v2350 = vand.u32 2147483647, %v2253
        %vm2351 = vcmp.lt.f32.partialorder %v2350, 0.0004427343
        %v2352 = vsel %vm2351, %v2349, %v2346
        %v2353 = vadd.f32 %v2255, 1.0
        %v2354 = vlog2.pop %v2353
        %v2355 = vmul.f32 %v2354, 0.6931472
        %v2356 = vmul.f32 -0.5, %v2255
        %v2357 = vadd.f32 %v2356, 1.0
        %v2358 = vmul.f32 %v2357, %v2255
        %v2359 = vand.u32 2147483647, %v2255
        %vm2360 = vcmp.lt.f32.partialorder %v2359, 0.0004427343
        %v2361 = vsel %vm2360, %v2358, %v2355
        %v2362 = vadd.f32 %v2257, 1.0
        %v2363 = vlog2.pop %v2362
        %v2364 = vmul.f32 %v2363, 0.6931472
        %v2365 = vmul.f32 -0.5, %v2257
        %v2366 = vadd.f32 %v2365, 1.0
        %v2367 = vmul.f32 %v2366, %v2257
        %v2368 = vand.u32 2147483647, %v2257
        %vm2369 = vcmp.lt.f32.partialorder %v2368, 0.0004427343
        %v2370 = vsel %vm2369, %v2367, %v2364
        %v2371 = vadd.f32 %v2259, 1.0
        %v2372 = vlog2.pop %v2371
        %v2373 = vmul.f32 %v2372, 0.6931472
        %v2374 = vmul.f32 -0.5, %v2259
        %v2375 = vadd.f32 %v2374, 1.0
        %v2376 = vmul.f32 %v2375, %v2259
        %v2377 = vand.u32 2147483647, %v2259
        %vm2378 = vcmp.lt.f32.partialorder %v2377, 0.0004427343
        %v2379 = vsel %vm2378, %v2376, %v2373
        %v2380 = vadd.f32 %v2261, 1.0
        %v2381 = vlog2.pop %v2380
        %v2382 = vmul.f32 %v2381, 0.6931472
        %v2383 = vmul.f32 -0.5, %v2261
        %v2384 = vadd.f32 %v2383, 1.0
        %v2385 = vmul.f32 %v2384, %v2261
        %v2386 = vand.u32 2147483647, %v2261
        %vm2387 = vcmp.lt.f32.partialorder %v2386, 0.0004427343
        %v2388 = vsel %vm2387, %v2385, %v2382
        %v2389 = vadd.f32 %v2263, 1.0
        %v2390 = vlog2.pop %v2389
        %v2391 = vmul.f32 %v2390, 0.6931472
        %v2392 = vmul.f32 -0.5, %v2263
        %v2393 = vadd.f32 %v2392, 1.0
        %v2394 = vmul.f32 %v2393, %v2263
        %v2395 = vand.u32 2147483647, %v2263
        %vm2396 = vcmp.lt.f32.partialorder %v2395, 0.0004427343
        %v2397 = vsel %vm2396, %v2394, %v2391
        %v2398 = vadd.f32 %v2265, 1.0
        %v2399 = vlog2.pop %v2398
        %v2400 = vmul.f32 %v2399, 0.6931472
        %v2401 = vmul.f32 -0.5, %v2265
        %v2402 = vadd.f32 %v2401, 1.0
        %v2403 = vmul.f32 %v2402, %v2265
        %v2404 = vand.u32 2147483647, %v2265
        %vm2405 = vcmp.lt.f32.partialorder %v2404, 0.0004427343
        %v2406 = vsel %vm2405, %v2403, %v2400
        %v2407 = vadd.f32 %v2267, 1.0
        %v2408 = vlog2.pop %v2407
        %v2409 = vmul.f32 %v2408, 0.6931472
        %v2410 = vmul.f32 -0.5, %v2267
        %v2411 = vadd.f32 %v2410, 1.0
        %v2412 = vmul.f32 %v2411, %v2267
        %v2413 = vand.u32 2147483647, %v2267
        %vm2414 = vcmp.lt.f32.partialorder %v2413, 0.0004427343
        %v2415 = vsel %vm2414, %v2412, %v2409
        %v2416 = vadd.f32 %v2269, 1.0
        %v2417 = vlog2.pop %v2416
        %v2418 = vmul.f32 %v2417, 0.6931472
        %v2419 = vmul.f32 -0.5, %v2269
        %v2420 = vadd.f32 %v2419, 1.0
        %v2421 = vmul.f32 %v2420, %v2269
        %v2422 = vand.u32 2147483647, %v2269
        %vm2423 = vcmp.lt.f32.partialorder %v2422, 0.0004427343
        %v2424 = vsel %vm2423, %v2421, %v2418
        %v2425 = vadd.f32 %v2271, 1.0
        %v2426 = vlog2.pop %v2425
        %v2427 = vmul.f32 %v2426, 0.6931472
        %v2428 = vmul.f32 -0.5, %v2271
        %v2429 = vadd.f32 %v2428, 1.0
        %v2430 = vmul.f32 %v2429, %v2271
        %v2431 = vand.u32 2147483647, %v2271
        %vm2432 = vcmp.lt.f32.partialorder %v2431, 0.0004427343
        %v2433 = vsel %vm2432, %v2430, %v2427
        %v2434 = vadd.f32 %v2273, 1.0
        %v2435 = vlog2.pop %v2434
        %v2436 = vmul.f32 %v2435, 0.6931472
        %v2437 = vmul.f32 -0.5, %v2273
        %v2438 = vadd.f32 %v2437, 1.0
        %v2439 = vmul.f32 %v2438, %v2273
        %v2440 = vand.u32 2147483647, %v2273
        %vm2441 = vcmp.lt.f32.partialorder %v2440, 0.0004427343
        %v2442 = vsel %vm2441, %v2439, %v2436
        %v2443 = vadd.f32 %v2275, 1.0
        %v2444 = vlog2.pop %v2443
        %v2445 = vmul.f32 %v2444, 0.6931472
        %v2446 = vmul.f32 -0.5, %v2275
        %v2447 = vadd.f32 %v2446, 1.0
        %v2448 = vmul.f32 %v2447, %v2275
        %v2449 = vand.u32 2147483647, %v2275
        %vm2450 = vcmp.lt.f32.partialorder %v2449, 0.0004427343
        %v2451 = vsel %vm2450, %v2448, %v2445
        %v2452 = vadd.f32 %v2277, 1.0
        %v2453 = vlog2.pop %v2452
        %v2454 = vmul.f32 %v2453, 0.6931472
        %v2455 = vmul.f32 -0.5, %v2277
        %v2456 = vadd.f32 %v2455, 1.0
        %v2457 = vmul.f32 %v2456, %v2277
        %v2458 = vand.u32 2147483647, %v2277
        %vm2459 = vcmp.lt.f32.partialorder %v2458, 0.0004427343
        %v2460 = vsel %vm2459, %v2457, %v2454
        %v2461 = vadd.f32 %v2279, 1.0
        %v2462 = vlog2.pop %v2461
        %v2463 = vmul.f32 %v2462, 0.6931472
        %v2464 = vmul.f32 -0.5, %v2279
        %v2465 = vadd.f32 %v2464, 1.0
        %v2466 = vmul.f32 %v2465, %v2279
        %v2467 = vand.u32 2147483647, %v2279
        %vm2468 = vcmp.lt.f32.partialorder %v2467, 0.0004427343
        %v2469 = vsel %vm2468, %v2466, %v2463
        %v2470 = vadd.f32 %v2281, 1.0
        %v2471 = vlog2.pop %v2470
        %v2472 = vmul.f32 %v2471, 0.6931472
        %v2473 = vmul.f32 -0.5, %v2281
        %v2474 = vadd.f32 %v2473, 1.0
        %v2475 = vmul.f32 %v2474, %v2281
        %v2476 = vand.u32 2147483647, %v2281
        %vm2477 = vcmp.lt.f32.partialorder %v2476, 0.0004427343
        %v2478 = vsel %vm2477, %v2475, %v2472
        %v2479 = vadd.f32 %v2283, 1.0
        %v2480 = vlog2.pop %v2479
        %v2481 = vmul.f32 %v2480, 0.6931472
        %v2482 = vmul.f32 -0.5, %v2283
        %v2483 = vadd.f32 %v2482, 1.0
        %v2484 = vmul.f32 %v2483, %v2283
        %v2485 = vand.u32 2147483647, %v2283
        %vm2486 = vcmp.lt.f32.partialorder %v2485, 0.0004427343
        %v2487 = vsel %vm2486, %v2484, %v2481
        %v2488 = vadd.f32 %v2285, 1.0
        %v2489 = vlog2.pop %v2488
        %v2490 = vmul.f32 %v2489, 0.6931472
        %v2491 = vmul.f32 -0.5, %v2285
        %v2492 = vadd.f32 %v2491, 1.0
        %v2493 = vmul.f32 %v2492, %v2285
        %v2494 = vand.u32 2147483647, %v2285
        %vm2495 = vcmp.lt.f32.partialorder %v2494, 0.0004427343
        %v2496 = vsel %vm2495, %v2493, %v2490
        %v2497 = vadd.f32 %v2287, 1.0
        %v2498 = vlog2.pop %v2497
        %v2499 = vmul.f32 %v2498, 0.6931472
        %v2500 = vmul.f32 -0.5, %v2287
        %v2501 = vadd.f32 %v2500, 1.0
        %v2502 = vmul.f32 %v2501, %v2287
        %v2503 = vand.u32 2147483647, %v2287
        %vm2504 = vcmp.lt.f32.partialorder %v2503, 0.0004427343
        %v2505 = vsel %vm2504, %v2502, %v2499
        %v2506 = vadd.f32 %v2289, 1.0
        %v2507 = vlog2.pop %v2506
        %v2508 = vmul.f32 %v2507, 0.6931472
        %v2509 = vmul.f32 -0.5, %v2289
        %v2510 = vadd.f32 %v2509, 1.0
        %v2511 = vmul.f32 %v2510, %v2289
        %v2512 = vand.u32 2147483647, %v2289
        %vm2513 = vcmp.lt.f32.partialorder %v2512, 0.0004427343
        %v2514 = vsel %vm2513, %v2511, %v2508
        %v2515 = vadd.f32 %v2291, 1.0
        %v2516 = vlog2.pop %v2515
        %v2517 = vmul.f32 %v2516, 0.6931472
        %v2518 = vmul.f32 -0.5, %v2291
        %v2519 = vadd.f32 %v2518, 1.0
        %v2520 = vmul.f32 %v2519, %v2291
        %v2521 = vand.u32 2147483647, %v2291
        %vm2522 = vcmp.lt.f32.partialorder %v2521, 0.0004427343
        %v2523 = vsel %vm2522, %v2520, %v2517
        %v2524 = vadd.f32 %v2293, 1.0
        %v2525 = vlog2.pop %v2524
        %v2526 = vmul.f32 %v2525, 0.6931472
        %v2527 = vmul.f32 -0.5, %v2293
        %v2528 = vadd.f32 %v2527, 1.0
        %v2529 = vmul.f32 %v2528, %v2293
        %v2530 = vand.u32 2147483647, %v2293
        %vm2531 = vcmp.lt.f32.partialorder %v2530, 0.0004427343
        %v2532 = vsel %vm2531, %v2529, %v2526
        %v2533 = vadd.f32 %v2295, 1.0
        %v2534 = vlog2.pop %v2533
        %v2535 = vmul.f32 %v2534, 0.6931472
        %v2536 = vmul.f32 -0.5, %v2295
        %v2537 = vadd.f32 %v2536, 1.0
        %v2538 = vmul.f32 %v2537, %v2295
        %v2539 = vand.u32 2147483647, %v2295
        %vm2540 = vcmp.lt.f32.partialorder %v2539, 0.0004427343
        %v2541 = vsel %vm2540, %v2538, %v2535
        %v2542 = vadd.f32 %v2297, 1.0
        %v2543 = vlog2.pop %v2542
        %v2544 = vmul.f32 %v2543, 0.6931472
        %v2545 = vmul.f32 -0.5, %v2297
        %v2546 = vadd.f32 %v2545, 1.0
        %v2547 = vmul.f32 %v2546, %v2297
        %v2548 = vand.u32 2147483647, %v2297
        %vm2549 = vcmp.lt.f32.partialorder %v2548, 0.0004427343
        %v2550 = vsel %vm2549, %v2547, %v2544
        %v2551 = vadd.f32 %v2299, 1.0
        %v2552 = vlog2.pop %v2551
        %v2553 = vmul.f32 %v2552, 0.6931472
        %v2554 = vmul.f32 -0.5, %v2299
        %v2555 = vadd.f32 %v2554, 1.0
        %v2556 = vmul.f32 %v2555, %v2299
        %v2557 = vand.u32 2147483647, %v2299
        %vm2558 = vcmp.lt.f32.partialorder %v2557, 0.0004427343
        %v2559 = vsel %vm2558, %v2556, %v2553
        %v2560 = vadd.f32 %v2301, 1.0
        %v2561 = vlog2.pop %v2560
        %v2562 = vmul.f32 %v2561, 0.6931472
        %v2563 = vmul.f32 -0.5, %v2301
        %v2564 = vadd.f32 %v2563, 1.0
        %v2565 = vmul.f32 %v2564, %v2301
        %v2566 = vand.u32 2147483647, %v2301
        %vm2567 = vcmp.lt.f32.partialorder %v2566, 0.0004427343
        %v2568 = vsel %vm2567, %v2565, %v2562
        %v2569 = vadd.f32 %v2303, 1.0
        %v2570 = vlog2.pop %v2569
        %v2571 = vmul.f32 %v2570, 0.6931472
        %v2572 = vmul.f32 -0.5, %v2303
        %v2573 = vadd.f32 %v2572, 1.0
        %v2574 = vmul.f32 %v2573, %v2303
        %v2575 = vand.u32 2147483647, %v2303
        %vm2576 = vcmp.lt.f32.partialorder %v2575, 0.0004427343
        %v2577 = vsel %vm2576, %v2574, %v2571
        %v2578 = vadd.f32 %v2305, 1.0
        %v2579 = vlog2.pop %v2578
        %v2580 = vmul.f32 %v2579, 0.6931472
        %v2581 = vmul.f32 -0.5, %v2305
        %v2582 = vadd.f32 %v2581, 1.0
        %v2583 = vmul.f32 %v2582, %v2305
        %v2584 = vand.u32 2147483647, %v2305
        %vm2585 = vcmp.lt.f32.partialorder %v2584, 0.0004427343
        %v2586 = vsel %vm2585, %v2583, %v2580
        %v2587 = vadd.f32 %v2307, 1.0
        %v2588 = vlog2.pop %v2587
        %v2589 = vmul.f32 %v2588, 0.6931472
        %v2590 = vmul.f32 -0.5, %v2307
        %v2591 = vadd.f32 %v2590, 1.0
        %v2592 = vmul.f32 %v2591, %v2307
        %v2593 = vand.u32 2147483647, %v2307
        %vm2594 = vcmp.lt.f32.partialorder %v2593, 0.0004427343
        %v2595 = vsel %vm2594, %v2592, %v2589
        %v2596 = vadd.f32 %v2148, %v2316
        %v2597 = vadd.f32 %v2149, %v2325
        %v2598 = vadd.f32 %v2150, %v2334
        %v2599 = vadd.f32 %v2151, %v2343
        %v2600 = vadd.f32 %v2152, %v2352
        %v2601 = vadd.f32 %v2153, %v2361
        %v2602 = vadd.f32 %v2154, %v2370
        %v2603 = vadd.f32 %v2155, %v2379
        %v2604 = vadd.f32 %v2156, %v2388
        %v2605 = vadd.f32 %v2157, %v2397
        %v2606 = vadd.f32 %v2158, %v2406
        %v2607 = vadd.f32 %v2159, %v2415
        %v2608 = vadd.f32 %v2160, %v2424
        %v2609 = vadd.f32 %v2161, %v2433
        %v2610 = vadd.f32 %v2162, %v2442
        %v2611 = vadd.f32 %v2163, %v2451
        %v2612 = vadd.f32 %v2164, %v2460
        %v2613 = vadd.f32 %v2165, %v2469
        %v2614 = vadd.f32 %v2166, %v2478
        %v2615 = vadd.f32 %v2167, %v2487
        %v2616 = vadd.f32 %v2168, %v2496
        %v2617 = vadd.f32 %v2169, %v2505
        %v2618 = vadd.f32 %v2170, %v2514
        %v2619 = vadd.f32 %v2171, %v2523
        %v2620 = vadd.f32 %v2172, %v2532
        %v2621 = vadd.f32 %v2173, %v2541
        %v2622 = vadd.f32 %v2174, %v2550
        %v2623 = vadd.f32 %v2175, %v2559
        %v2624 = vadd.f32 %v2176, %v2568
        %v2625 = vadd.f32 %v2177, %v2577
        %v2626 = vadd.f32 %v2178, %v2586
        %v2627 = vadd.f32 %v2179, %v2595
        %v2628 = vcombine.low %v2020, %v2020
        %v2629 = vcombine.low %v2021, %v2021
        %v2630 = vcombine.low %v2022, %v2022
        %v2631 = vcombine.low %v2023, %v2023
        %v2632 = vcombine.low %v2024, %v2024
        %v2633 = vcombine.low %v2025, %v2025
        %v2634 = vcombine.low %v2026, %v2026
        %v2635 = vcombine.low %v2027, %v2027
        %v2636 = vcombine.low %v2028, %v2028
        %v2637 = vcombine.low %v2029, %v2029
        %v2638 = vcombine.low %v2030, %v2030
        %v2639 = vcombine.low %v2031, %v2031
        %v2640 = vcombine.low %v2032, %v2032
        %v2641 = vcombine.low %v2033, %v2033
        %v2642 = vcombine.low %v2034, %v2034
        %v2643 = vcombine.low %v2035, %v2035
        %v2660 = vmul.f32 %v839, %v2628
        %v2661 = vmul.f32 %v841, %v2020
        %v2662 = vmul.f32 %v880, %v2629
        %v2663 = vmul.f32 %v882, %v2021
        %v2664 = vmul.f32 %v921, %v2630
        %v2665 = vmul.f32 %v923, %v2022
        %v2666 = vmul.f32 %v962, %v2631
        %v2667 = vmul.f32 %v964, %v2023
        %v2668 = vmul.f32 %v1003, %v2632
        %v2669 = vmul.f32 %v1005, %v2024
        %v2670 = vmul.f32 %v1044, %v2633
        %v2671 = vmul.f32 %v1046, %v2025
        %v2672 = vmul.f32 %v1085, %v2634
        %v2673 = vmul.f32 %v1087, %v2026
        %v2674 = vmul.f32 %v1126, %v2635
        %v2675 = vmul.f32 %v1128, %v2027
        %v2676 = vmul.f32 %v1167, %v2636
        %v2677 = vmul.f32 %v1169, %v2028
        %v2678 = vmul.f32 %v1208, %v2637
        %v2679 = vmul.f32 %v1210, %v2029
        %v2680 = vmul.f32 %v1249, %v2638
        %v2681 = vmul.f32 %v1251, %v2030
        %v2682 = vmul.f32 %v1290, %v2639
        %v2683 = vmul.f32 %v1292, %v2031
        %v2684 = vmul.f32 %v1331, %v2640
        %v2685 = vmul.f32 %v1333, %v2032
        %v2686 = vmul.f32 %v1372, %v2641
        %v2687 = vmul.f32 %v1374, %v2033
        %v2688 = vmul.f32 %v1413, %v2642
        %v2689 = vmul.f32 %v1415, %v2034
        %v2690 = vmul.f32 %v1454, %v2643
        %v2691 = vmul.f32 %v1456, %v2035
        %v2692 = vsub.f32 %v2036, %v2660
        %v2693 = vsub.f32 %v2037, %v2661
        %v2694 = vsub.f32 %v2038, %v2662
        %v2695 = vsub.f32 %v2039, %v2663
        %v2696 = vsub.f32 %v2040, %v2664
        %v2697 = vsub.f32 %v2041, %v2665
        %v2698 = vsub.f32 %v2042, %v2666
        %v2699 = vsub.f32 %v2043, %v2667
        %v2700 = vsub.f32 %v2044, %v2668
        %v2701 = vsub.f32 %v2045, %v2669
        %v2702 = vsub.f32 %v2046, %v2670
        %v2703 = vsub.f32 %v2047, %v2671
        %v2704 = vsub.f32 %v2048, %v2672
        %v2705 = vsub.f32 %v2049, %v2673
        %v2706 = vsub.f32 %v2050, %v2674
        %v2707 = vsub.f32 %v2051, %v2675
        %v2708 = vsub.f32 %v2052, %v2676
        %v2709 = vsub.f32 %v2053, %v2677
        %v2710 = vsub.f32 %v2054, %v2678
        %v2711 = vsub.f32 %v2055, %v2679
        %v2712 = vsub.f32 %v2056, %v2680
        %v2713 = vsub.f32 %v2057, %v2681
        %v2714 = vsub.f32 %v2058, %v2682
        %v2715 = vsub.f32 %v2059, %v2683
        %v2716 = vsub.f32 %v2060, %v2684
        %v2717 = vsub.f32 %v2061, %v2685
        %v2718 = vsub.f32 %v2062, %v2686
        %v2719 = vsub.f32 %v2063, %v2687
        %v2720 = vsub.f32 %v2064, %v2688
        %v2721 = vsub.f32 %v2065, %v2689
        %v2722 = vsub.f32 %v2066, %v2690
        %v2723 = vsub.f32 %v2067, %v2691
        %v2724 = vadd.f32 %v2692, %v2316
        %v2725 = vadd.f32 %v2693, %v2325
        %v2726 = vadd.f32 %v2694, %v2334
        %v2727 = vadd.f32 %v2695, %v2343
        %v2728 = vadd.f32 %v2696, %v2352
        %v2729 = vadd.f32 %v2697, %v2361
        %v2730 = vadd.f32 %v2698, %v2370
        %v2731 = vadd.f32 %v2699, %v2379
        %v2732 = vadd.f32 %v2700, %v2388
        %v2733 = vadd.f32 %v2701, %v2397
        %v2734 = vadd.f32 %v2702, %v2406
        %v2735 = vadd.f32 %v2703, %v2415
        %v2736 = vadd.f32 %v2704, %v2424
        %v2737 = vadd.f32 %v2705, %v2433
        %v2738 = vadd.f32 %v2706, %v2442
        %v2739 = vadd.f32 %v2707, %v2451
        %v2740 = vadd.f32 %v2708, %v2460
        %v2741 = vadd.f32 %v2709, %v2469
        %v2742 = vadd.f32 %v2710, %v2478
        %v2743 = vadd.f32 %v2711, %v2487
        %v2744 = vadd.f32 %v2712, %v2496
        %v2745 = vadd.f32 %v2713, %v2505
        %v2746 = vadd.f32 %v2714, %v2514
        %v2747 = vadd.f32 %v2715, %v2523
        %v2748 = vadd.f32 %v2716, %v2532
        %v2749 = vadd.f32 %v2717, %v2541
        %v2750 = vadd.f32 %v2718, %v2550
        %v2751 = vadd.f32 %v2719, %v2559
        %v2752 = vadd.f32 %v2720, %v2568
        %v2753 = vadd.f32 %v2721, %v2577
        %v2754 = vadd.f32 %v2722, %v2586
        %v2755 = vadd.f32 %v2723, %v2595
        %vm2756 = vcmask 1043456
        %v2757 = vsel %vm2756, %v2596, 0.0
        %v2758 = vsel %vm2756, %v2597, 0.0
        %v2759 = vadd.f32 %v2757, %v2758
        %v2760 = vsel %vm2756, %v2598, 0.0
        %v2761 = vadd.f32 %v2759, %v2760
        %v2762 = vsel %vm2756, %v2599, 0.0
        %v2763 = vadd.f32 %v2761, %v2762
        %v2764 = vsel %vm2756, %v2600, 0.0
        %v2765 = vadd.f32 %v2763, %v2764
        %v2766 = vsel %vm2756, %v2601, 0.0
        %v2767 = vadd.f32 %v2765, %v2766
        %v2768 = vsel %vm2756, %v2602, 0.0
        %v2769 = vadd.f32 %v2767, %v2768
        %v2770 = vsel %vm2756, %v2603, 0.0
        %v2771 = vadd.f32 %v2769, %v2770
        %v2772 = vsel %vm2756, %v2604, 0.0
        %v2773 = vadd.f32 %v2771, %v2772
        %v2774 = vsel %vm2756, %v2605, 0.0
        %v2775 = vadd.f32 %v2773, %v2774
        %v2776 = vsel %vm2756, %v2606, 0.0
        %v2777 = vadd.f32 %v2775, %v2776
        %v2778 = vsel %vm2756, %v2607, 0.0
        %v2779 = vadd.f32 %v2777, %v2778
        %v2780 = vsel %vm2756, %v2608, 0.0
        %v2781 = vadd.f32 %v2779, %v2780
        %v2782 = vsel %vm2756, %v2609, 0.0
        %v2783 = vadd.f32 %v2781, %v2782
        %v2784 = vsel %vm2756, %v2610, 0.0
        %v2785 = vadd.f32 %v2783, %v2784
        %v2786 = vsel %vm2756, %v2611, 0.0
        %v2787 = vadd.f32 %v2785, %v2786
        %v2788 = vsel %vm2756, %v2612, 0.0
        %v2789 = vadd.f32 %v2787, %v2788
        %v2790 = vsel %vm2756, %v2613, 0.0
        %v2791 = vadd.f32 %v2789, %v2790
        %v2792 = vsel %vm2756, %v2614, 0.0
        %v2793 = vadd.f32 %v2791, %v2792
        %v2794 = vsel %vm2756, %v2615, 0.0
        %v2795 = vadd.f32 %v2793, %v2794
        %v2796 = vsel %vm2756, %v2616, 0.0
        %v2797 = vadd.f32 %v2795, %v2796
        %v2798 = vsel %vm2756, %v2617, 0.0
        %v2799 = vadd.f32 %v2797, %v2798
        %v2800 = vsel %vm2756, %v2618, 0.0
        %v2801 = vadd.f32 %v2799, %v2800
        %v2802 = vsel %vm2756, %v2619, 0.0
        %v2803 = vadd.f32 %v2801, %v2802
        %v2804 = vsel %vm2756, %v2620, 0.0
        %v2805 = vadd.f32 %v2803, %v2804
        %v2806 = vsel %vm2756, %v2621, 0.0
        %v2807 = vadd.f32 %v2805, %v2806
        %v2808 = vsel %vm2756, %v2622, 0.0
        %v2809 = vadd.f32 %v2807, %v2808
        %v2810 = vsel %vm2756, %v2623, 0.0
        %v2811 = vadd.f32 %v2809, %v2810
        %v2812 = vsel %vm2756, %v2624, 0.0
        %v2813 = vadd.f32 %v2811, %v2812
        %v2814 = vsel %vm2756, %v2625, 0.0
        %v2815 = vadd.f32 %v2813, %v2814
        %v2816 = vsel %vm2756, %v2626, 0.0
        %v2817 = vadd.f32 %v2815, %v2816
        %v2818 = vsel %vm2756, %v2627, 0.0
        %v2819 = vadd.f32 %v2817, %v2818
        %2820 = vadd.xlane.f32.xlu0 %v2819
        %v2821 = vpop.xlane.xlu0 %2820
        %v2822 = vrot.slane %v2821, 4
        %v2823 = vadd.f32 %v2821, %v2822
        %v2824 = vrot.slane %v2823, 2
        %v2825 = vadd.f32 %v2823, %v2824
        %v2826 = vrot.slane %v2825, 1
        %v2827 = vadd.f32 %v2825, %v2826
        %s2828 = vtos %v2827
        %v2861 = vrot.slane %v2724, 4
        %v2862 = vrot.slane %v2725, 4
        %v2863 = vrot.slane %v2726, 4
        %v2864 = vrot.slane %v2727, 4
        %v2865 = vrot.slane %v2728, 4
        %v2866 = vrot.slane %v2729, 4
        %v2867 = vrot.slane %v2730, 4
        %v2868 = vrot.slane %v2731, 4
        %v2869 = vrot.slane %v2732, 4
        %v2870 = vrot.slane %v2733, 4
        %v2871 = vrot.slane %v2734, 4
        %v2872 = vrot.slane %v2735, 4
        %v2873 = vrot.slane %v2736, 4
        %v2874 = vrot.slane %v2737, 4
        %v2875 = vrot.slane %v2738, 4
        %v2876 = vrot.slane %v2739, 4
        %v2877 = vrot.slane %v2740, 4
        %v2878 = vrot.slane %v2741, 4
        %v2879 = vrot.slane %v2742, 4
        %v2880 = vrot.slane %v2743, 4
        %v2881 = vrot.slane %v2744, 4
        %v2882 = vrot.slane %v2745, 4
        %v2883 = vrot.slane %v2746, 4
        %v2884 = vrot.slane %v2747, 4
        %v2885 = vrot.slane %v2748, 4
        %v2886 = vrot.slane %v2749, 4
        %v2887 = vrot.slane %v2750, 4
        %v2888 = vrot.slane %v2751, 4
        %v2889 = vrot.slane %v2752, 4
        %v2890 = vrot.slane %v2753, 4
        %v2891 = vrot.slane %v2754, 4
        %v2892 = vrot.slane %v2755, 4
        %v2925 = vsel %vm2756, %v2861, 0.0
        %v2926 = vsel %vm2756, %v2862, 0.0
        %v2927 = vadd.f32 %v2925, %v2926
        %v2928 = vsel %vm2756, %v2863, 0.0
        %v2929 = vadd.f32 %v2927, %v2928
        %v2930 = vsel %vm2756, %v2864, 0.0
        %v2931 = vadd.f32 %v2929, %v2930
        %v2932 = vsel %vm2756, %v2865, 0.0
        %v2933 = vadd.f32 %v2931, %v2932
        %v2934 = vsel %vm2756, %v2866, 0.0
        %v2935 = vadd.f32 %v2933, %v2934
        %v2936 = vsel %vm2756, %v2867, 0.0
        %v2937 = vadd.f32 %v2935, %v2936
        %v2938 = vsel %vm2756, %v2868, 0.0
        %v2939 = vadd.f32 %v2937, %v2938
        %v2940 = vsel %vm2756, %v2869, 0.0
        %v2941 = vadd.f32 %v2939, %v2940
        %v2942 = vsel %vm2756, %v2870, 0.0
        %v2943 = vadd.f32 %v2941, %v2942
        %v2944 = vsel %vm2756, %v2871, 0.0
        %v2945 = vadd.f32 %v2943, %v2944
        %v2946 = vsel %vm2756, %v2872, 0.0
        %v2947 = vadd.f32 %v2945, %v2946
        %v2948 = vsel %vm2756, %v2873, 0.0
        %v2949 = vadd.f32 %v2947, %v2948
        %v2950 = vsel %vm2756, %v2874, 0.0
        %v2951 = vadd.f32 %v2949, %v2950
        %v2952 = vsel %vm2756, %v2875, 0.0
        %v2953 = vadd.f32 %v2951, %v2952
        %v2954 = vsel %vm2756, %v2876, 0.0
        %v2955 = vadd.f32 %v2953, %v2954
        %v2956 = vsel %vm2756, %v2877, 0.0
        %v2957 = vadd.f32 %v2955, %v2956
        %v2958 = vsel %vm2756, %v2878, 0.0
        %v2959 = vadd.f32 %v2957, %v2958
        %v2960 = vsel %vm2756, %v2879, 0.0
        %v2961 = vadd.f32 %v2959, %v2960
        %v2962 = vsel %vm2756, %v2880, 0.0
        %v2963 = vadd.f32 %v2961, %v2962
        %v2964 = vsel %vm2756, %v2881, 0.0
        %v2965 = vadd.f32 %v2963, %v2964
        %v2966 = vsel %vm2756, %v2882, 0.0
        %v2967 = vadd.f32 %v2965, %v2966
        %v2968 = vsel %vm2756, %v2883, 0.0
        %v2969 = vadd.f32 %v2967, %v2968
        %v2970 = vsel %vm2756, %v2884, 0.0
        %v2971 = vadd.f32 %v2969, %v2970
        %v2972 = vsel %vm2756, %v2885, 0.0
        %v2973 = vadd.f32 %v2971, %v2972
        %v2974 = vsel %vm2756, %v2886, 0.0
        %v2975 = vadd.f32 %v2973, %v2974
        %v2976 = vsel %vm2756, %v2887, 0.0
        %v2977 = vadd.f32 %v2975, %v2976
        %v2978 = vsel %vm2756, %v2888, 0.0
        %v2979 = vadd.f32 %v2977, %v2978
        %v2980 = vsel %vm2756, %v2889, 0.0
        %v2981 = vadd.f32 %v2979, %v2980
        %v2982 = vsel %vm2756, %v2890, 0.0
        %v2983 = vadd.f32 %v2981, %v2982
        %v2984 = vsel %vm2756, %v2891, 0.0
        %v2985 = vadd.f32 %v2983, %v2984
        %v2986 = vsel %vm2756, %v2892, 0.0
        %v2987 = vadd.f32 %v2985, %v2986
        %2988 = vadd.xlane.f32.xlu0 %v2987
        %v2989 = vpop.xlane.xlu0 %2988
        %v2990 = vrot.slane %v2989, 4
        %v2991 = vadd.f32 %v2989, %v2990
        %v2992 = vrot.slane %v2991, 2
        %v2993 = vadd.f32 %v2991, %v2992
        %v2994 = vrot.slane %v2993, 1
        %v2995 = vadd.f32 %v2993, %v2994
        %s2996 = vtos %v2995
        %s2997 = sadd.f32 %s2828, %s2996
        %v2998 = vstv %s2997
        %2999 = vst [vmem:[%s317] sm:$0xff] %v2998
        %s3000 = sand.u32 %s144, 1
        %s3001 = scalar_lea.sflag [#allocation3], %s3000
        %s3002 = sand.u32 %s144, 1
        %s3003 = smul.addr %s3002, 128
        %s3004 = scalar_lea.vmem [#allocation2], %s3003
        %s3005 = sand.u32 %s24, 1
        %s3006 = scalar_lea.sflag [#allocation5], %s3005
        %s3007 = sand.u32 %s172, 1
        %s3008 = smul.addr %s3007, 64
        %s3009 = scalar_lea.vmem [#allocation4], %s3008
        %s3010 = sand.u32 %s24, 1
        %s3011 = scalar_lea.sflag [#allocation5], %s3010
        %s3012 = sand.u32 %s200, 1
        %s3013 = smul.addr %s3012, 8
        %s3014 = scalar_lea.vmem [#allocation6], %s3013
        // Predicated region
        $region37: #{tpu_custom_call.1} parent=35 // pred_check
          %p3015 = pneg %p154
        $region38: #{tpu_custom_call.1} parent=35 // pred_check_branch
          %3017 = sbr.rel (%p3015) target = $region40
        $region39: #{tpu_custom_call.1} parent=35 // pred_region
          %s3018 = smul.u32 32, %s29
          %s3020 = ssub.s32 2048, 2048
          %3021 = vsyncadd %s3001, %s3020
          %s3022 = smul.addr %s28, 32
          %s3023 = sadd.s32 %s3018, %s3022
          %s3024 = smul.addr %s3023, 64
          %s3025 = scalar_lea.hbm %s4, %s3024
          %s3027 = sshll.u32 %s3004, 4
          %s3028 = int_to_ptr.vmem [resolvable:$true] %s3027
          %3030 = dma.vmem_to_hbm [thread:$0]  %s3028, 2048, %s3025, %s3001
        $region40: #{tpu_custom_call.1} parent=35 // pred_fallthru
          _
        // Predicated region
        $region41: #{tpu_custom_call.1} parent=35 // pred_check
          %p3031 = pneg %p182
        $region42: #{tpu_custom_call.1} parent=35 // pred_check_branch
          %3033 = sbr.rel (%p3031) target = $region44
        $region43: #{tpu_custom_call.1} parent=35 // pred_region
          %s3034 = smul.u32 32, %s29
          %s3036 = ssub.s32 1024, 1024
          %3037 = vsyncadd %s3006, %s3036
          %s3038 = smul.addr %s28, 32
          %s3039 = sadd.s32 %s3034, %s3038
          %s3040 = smul.addr %s3039, 32
          %s3041 = scalar_lea.hbm %s5, %s3040
          %s3043 = sshll.u32 %s3009, 4
          %s3044 = int_to_ptr.vmem [resolvable:$true] %s3043
          %3046 = dma.vmem_to_hbm [thread:$0]  %s3044, 1024, %s3041, %s3006
        $region44: #{tpu_custom_call.1} parent=35 // pred_fallthru
          _
        // Predicated region
        $region45: #{tpu_custom_call.1} parent=35 // pred_check
          %p3047 = pneg %p210
        $region46: #{tpu_custom_call.1} parent=35 // pred_check_branch
          %3049 = sbr.rel (%p3047) target = $region48
        $region47: #{tpu_custom_call.1} parent=35 // pred_region
          %s3051 = ssub.s32 128, 128
          %3052 = vsyncadd %s3011, %s3051
          %s3053 = sadd.s32 %s29, %s28
          %s3054 = smul.addr %s3053, 128
          %s3055 = scalar_lea.hbm %s6, %s3054
          %s3057 = sshll.u32 %s3014, 4
          %s3058 = int_to_ptr.vmem [resolvable:$true] %s3057
          %3060 = dma.vmem_to_hbm [thread:$0]  %s3058, 128, %s3055, %s3011
        $region48: #{tpu_custom_call.1} parent=35 // pred_fallthru
          _
      $region36: #{tpu_custom_call.1} parent=5 // pred_fallthru
        _
      %p3061 = scmp.le.s32.totalorder 2, %s19
      // Predicated region
      $region49: #{tpu_custom_call.1} parent=5 // pred_check
        %p3062 = pneg %p3061
      $region50: #{tpu_custom_call.1} parent=5 // pred_check_branch
        %3064 = sbr.rel (%p3062) target = $region52
      $region51: #{tpu_custom_call.1} parent=5 // pred_region
        %s3065 = ssub.s32 %s19, 2
        // Predicated region
        $region53: #{tpu_custom_call.1} parent=51 // pred_check
          %p3066 = pneg %p160
        $region54: #{tpu_custom_call.1} parent=51 // pred_check_branch
          %3068 = sbr.rel (%p3066) target = $region56
        $region55: #{tpu_custom_call.1} parent=51 // pred_region
          %s3069 = sand.u32 %s145, 1
          %s3070 = scalar_lea.sflag [#allocation3], %s3069
          %s3071 = sand.u32 %s145, 1
          %s3072 = smul.addr %s3071, 128
          %s3073 = scalar_lea.vmem [#allocation2], %s3072
          %3074 = dma.done %s3070, 2048
        $region56: #{tpu_custom_call.1} parent=51 // pred_fallthru
          _
        // Predicated region
        $region57: #{tpu_custom_call.1} parent=51 // pred_check
          %p3075 = pneg %p188
        $region58: #{tpu_custom_call.1} parent=51 // pred_check_branch
          %3077 = sbr.rel (%p3075) target = $region60
        $region59: #{tpu_custom_call.1} parent=51 // pred_region
          %s3078 = sand.u32 %s25, 1
          %s3079 = scalar_lea.sflag [#allocation5], %s3078
          %s3080 = sand.u32 %s173, 1
          %s3081 = smul.addr %s3080, 64
          %s3082 = scalar_lea.vmem [#allocation4], %s3081
          %3083 = dma.done %s3079, 1024
        $region60: #{tpu_custom_call.1} parent=51 // pred_fallthru
          _
        // Predicated region
        $region61: #{tpu_custom_call.1} parent=51 // pred_check
          %p3084 = pneg %p216
        $region62: #{tpu_custom_call.1} parent=51 // pred_check_branch
          %3086 = sbr.rel (%p3084) target = $region64
        $region63: #{tpu_custom_call.1} parent=51 // pred_region
          %s3087 = sand.u32 %s25, 1
          %s3088 = scalar_lea.sflag [#allocation5], %s3087
          %s3089 = sand.u32 %s201, 1
          %s3090 = smul.addr %s3089, 8
          %s3091 = scalar_lea.vmem [#allocation6], %s3090
          %3092 = dma.done %s3088, 128
        $region64: #{tpu_custom_call.1} parent=51 // pred_fallthru
          _
      $region52: #{tpu_custom_call.1} parent=5 // pred_fallthru
        _
    $region6: #{tpu_custom_call.1} parent=1 // loop_footer
      %s23 = sadd.s32 1, %s19
    $region7: #{tpu_custom_call.1} parent=1 // loop_footer_branch
      %18 = sbr.rel target = $region3
    $region8: #{tpu_custom_call.1} parent=1 // loop_exit
      _
    %3093 = vsyncpa [#allocation3], 1
    %s3094 = scalar_lea.sflag [#allocation3], 1
    %3095 = vsyncpa %s3094, 1
    %3096 = vsyncpa [#allocation5], 1
    %s3097 = scalar_lea.sflag [#allocation5], 1
    %3098 = vsyncpa %s3097, 1

</llo_original>
